<compile_context>
chip_gen: v7x
topology: tpu7x:2x2x1
jax: 0.10.0
libtpu: 0.0.40
codegen_flags: <defaults>
</compile_context>

<pallas_src>
import numpy as np
import jax
import jax.numpy as jnp
from jax import lax
from jax.experimental import pallas as pl
from jax.experimental.pallas import tpu as pltpu


# ----------------------------------------------------------------------------
# host-side helpers (trace-time constants)
# ----------------------------------------------------------------------------
def _bilinear_matrix(n_in, n_out):
    """1-D linear interpolation matrix (n_out, n_in), align_corners=True."""
    A = np.zeros((n_out, n_in), dtype=np.float32)
    if n_in == 1:
        A[:, 0] = 1.0
        return A
    scale = (n_in - 1) / (n_out - 1)
    for i in range(n_out):
        src = i * scale
        i0 = min(int(np.floor(src)), n_in - 2)
        frac = src - i0
        A[i, i0] += 1.0 - frac
        A[i, i0 + 1] += frac
    return A


def _upsample_pad_matrix(H1, W1, H2, W2, py0, px0):
    """(H1*W1, (H2+2)*(W2+2)) matrix that performs the 2x bilinear upsample,
    the F.pad placement, and the 1-pixel conv halo in one matmul over the
    flat padded (row stride W2+2) layout."""
    H2u, W2u = 2 * H1, 2 * W1
    A = _bilinear_matrix(H1, H2u)            # (H2u, H1)
    B = _bilinear_matrix(W1, W2u)            # (W2u, W1)
    M4 = np.einsum('ph,qw->hwpq', A, B).reshape(H1 * W1, H2u, W2u)
    Mp = np.zeros((H1 * W1, H2 + 2, W2 + 2), np.float32)
    Mp[:, py0 + 1:py0 + 1 + H2u, px0 + 1:px0 + 1 + W2u] = M4
    return Mp.reshape(H1 * W1, (H2 + 2) * (W2 + 2))


def _valid_center_mask(H2, W2):
    """(1, Lc) mask: 1 at flat positions that are real pixels, 0 at the
    zero-pad columns interleaved in the flat row layout."""
    Wr = W2 + 2
    Lc = H2 * Wr - 2
    j = np.arange(Lc)
    return ((j % Wr) < W2).astype(np.float32).reshape(1, Lc)


def _fold_bn(w_oihw, conv_b, gamma, beta, mean, var, eps=1e-5):
    """Fold eval-mode BatchNorm + conv bias into the conv weights.
    Returns w_flat (O, 9*I) in (dy, dx, ci) tap order and bias (O, 1)."""
    scale = gamma / jnp.sqrt(var + eps)
    bias = beta + (conv_b - mean) * scale
    O, I, _, _ = w_oihw.shape
    w_flat = jnp.transpose(w_oihw, (0, 2, 3, 1)).reshape(O, 9 * I)
    return w_flat * scale[:, None], bias.reshape(O, 1)


# ----------------------------------------------------------------------------
# fused Pallas kernel (per batch element)
# ----------------------------------------------------------------------------
def _make_fused_up_kernel(H2, W2, C1, C2):
    Wr = W2 + 2                 # padded row stride
    Lc = H2 * Wr - 2            # number of flat conv "centers" computed
    Cin = C1 + C2

    def kernel(x1_ref, x2_ref, m_ref, mask_ref,
               w1_ref, b1_ref, w2_ref, b2_ref,
               o_ref, xpad, ypad, p1, p2):
        # x1_ref : (1, C1, H1*W1)        flattened low-res input
        # x2_ref : (1, C2, H2*Wr)        skip connection, W-padded + flattened
        # m_ref  : (H1*W1, (H2+2)*Wr)    upsample + pad matrix
        # mask   : (1, Lc)               valid-center mask
        # w1/w2  : (Cmid, 9*Cin) / (Cout, 9*Cmid)  BN-folded conv weights
        # b1/b2  : (Cmid, 1) / (Cout, 1)
        # o_ref  : (1, Cout, Lc)
        # xpad   : VMEM (Cin,  (H2+2)*Wr)  padded concat input
        # ypad   : VMEM (Cmid, (H2+2)*Wr)  padded conv1 output
        # p1, p2 : VMEM im2col scratch (9*Cin, Lc) / (9*Cmid, Lc)
        Cmid = w1_ref.shape[0]

        def conv3x3(src_pad, p_ref, w, b, cin):
            # flat-layout im2col: tap (dy,dx) is a contiguous lane slice at
            # offset dy*Wr+dx -> one matmul, K = 9*cin, N = Lc (lane-dense).
            for k in range(9):
                dy, dx = divmod(k, 3)
                off = dy * Wr + dx
                p_ref[k * cin:(k + 1) * cin, :] = src_pad[:, off:off + Lc]
            acc = jnp.dot(w, p_ref[...], preferred_element_type=jnp.float32)
            return jnp.maximum(acc + b, 0.0)        # BN folded: bias + ReLU

        # -- upsample + F.pad + channel concat, written straight into the
        #    zero-padded conv1 input scratch (one MXU matmul, all channels) --
        xpad[...] = jnp.zeros_like(xpad)
        xpad[0:C2, Wr:Wr + H2 * Wr] = x2_ref[0]
        xpad[C2:Cin, :] = jnp.dot(x1_ref[0], m_ref[...],
                                  preferred_element_type=jnp.float32)

        # -- conv1 + BN + ReLU; mask zeroes the interleaved pad columns so
        #    they act as true zero padding for conv2 --------------------------
        y1 = conv3x3(xpad, p1, w1_ref[...], b1_ref[...], Cin) * mask_ref[...]

        # -- re-embed into padded layout, conv2 + BN + ReLU --------------------
        ypad[...] = jnp.zeros_like(ypad)
        ypad[:, Wr + 1:Wr + 1 + Lc] = y1
        o_ref[0] = conv3x3(ypad, p2, w2_ref[...], b2_ref[...],
                           Cmid).astype(o_ref.dtype)

    return kernel


# ----------------------------------------------------------------------------
# public wrapper (NCHW in, NCHW out — no layout transposes anywhere)
# ----------------------------------------------------------------------------
def up_forward(params, x1, x2):
    """x1: (N, C1, H1, W1), x2: (N, C2, H2, W2) NCHW -> (N, out_ch, H2, W2)."""
    N, C1, H1, W1 = x1.shape
    _, C2, H2, W2 = x2.shape
    H2u, W2u = 2 * H1, 2 * W1
    py0 = (H2 - H2u) // 2
    px0 = (W2 - W2u) // 2
    Cin = C1 + C2
    Cmid = params["w1"].shape[0]
    Cout = params["w2"].shape[0]
    assert params["w1"].shape[1] == Cin

    Wr = W2 + 2
    Lp = (H2 + 2) * Wr
    Lc = H2 * Wr - 2

    # trace-time constants
    M = jnp.asarray(_upsample_pad_matrix(H1, W1, H2, W2, py0, px0))
    mask = jnp.asarray(_valid_center_mask(H2, W2))
    w1, b1 = _fold_bn(params["w1"], params["b1"], params["bn1_gamma"],
                      params["bn1_beta"], params["bn1_mean"], params["bn1_var"])
    w2, b2 = _fold_bn(params["w2"], params["b2"], params["bn2_gamma"],
                      params["bn2_beta"], params["bn2_mean"], params["bn2_var"])

    # cheap XLA-side layout prep (bitcast reshapes + a 1-px W pad of x2)
    x1f = x1.reshape(N, C1, H1 * W1)
    x2f = jnp.pad(x2, ((0, 0), (0, 0), (0, 0), (1, 1))).reshape(N, C2, H2 * Wr)

    kernel = _make_fused_up_kernel(H2, W2, C1, C2)
    out_flat = pl.pallas_call(
        kernel,
        out_shape=jax.ShapeDtypeStruct((N, Cout, Lc), jnp.float32),
        grid=(N,),
        in_specs=[
            pl.BlockSpec((1, C1, H1 * W1), lambda n: (n, 0, 0)),
            pl.BlockSpec((1, C2, H2 * Wr), lambda n: (n, 0, 0)),
            pl.BlockSpec((H1 * W1, Lp), lambda n: (0, 0)),
            pl.BlockSpec((1, Lc), lambda n: (0, 0)),
            pl.BlockSpec((Cmid, 9 * Cin), lambda n: (0, 0)),
            pl.BlockSpec((Cmid, 1), lambda n: (0, 0)),
            pl.BlockSpec((Cout, 9 * Cmid), lambda n: (0, 0)),
            pl.BlockSpec((Cout, 1), lambda n: (0, 0)),
        ],
        out_specs=pl.BlockSpec((1, Cout, Lc), lambda n: (n, 0, 0)),
        scratch_shapes=[
            pltpu.VMEM((Cin, Lp), jnp.float32),       # padded concat input
            pltpu.VMEM((Cmid, Lp), jnp.float32),      # padded conv1 output
            pltpu.VMEM((9 * Cin, Lc), jnp.float32),   # conv1 im2col matrix
            pltpu.VMEM((9 * Cmid, Lc), jnp.float32),  # conv2 im2col matrix
        ],
        compiler_params=pltpu.CompilerParams(
            dimension_semantics=("parallel",)),
    )(x1f, x2f, M, mask, w1, b1, w2, b2)

    # drop the interleaved pad columns: flat index j = h*(W2+2) + w
    out = jnp.pad(out_flat, ((0, 0), (0, 0), (0, 2)))
    out = out.reshape(N, Cout, H2, Wr)[:, :, :, :W2]
    return out


# ----------------------------------------------------------------------------
# parameters
# ----------------------------------------------------------------------------
def init_up_params(key, in_ch, out_ch):
    ks = jax.random.split(key, 12)

    def bn(kg, kb, km, kv, c):
        return (1.0 + 0.1 * jax.random.normal(kg, (c,), jnp.float32),
                0.05 * jax.random.normal(kb, (c,), jnp.float32),
                0.02 * jax.random.normal(km, (c,), jnp.float32),
                0.5 + jnp.abs(0.5 * jax.random.normal(kv, (c,), jnp.float32)))

    g1, bt1, m1, v1 = bn(ks[2], ks[3], ks[4], ks[5], out_ch)
    g2, bt2, m2, v2 = bn(ks[8], ks[9], ks[10], ks[11], out_ch)
    return dict(
        w1=0.1 * jax.random.normal(ks[0], (out_ch, in_ch, 3, 3), jnp.float32),
        b1=0.05 * jax.random.normal(ks[1], (out_ch,), jnp.float32),
        bn1_gamma=g1, bn1_beta=bt1, bn1_mean=m1, bn1_var=v1,
        w2=0.1 * jax.random.normal(ks[6], (out_ch, out_ch, 3, 3), jnp.float32),
        b2=0.05 * jax.random.normal(ks[7], (out_ch,), jnp.float32),
        bn2_gamma=g2, bn2_beta=bt2, bn2_mean=m2, bn2_var=v2,
    )


# ----------------------------------------------------------------------------
# pure-JAX reference (matches PyTorch eval-mode semantics)
# ----------------------------------------------------------------------------
def _ref_forward(params, x1, x2):
    N, C, H, W = x1.shape
    A = jnp.asarray(_bilinear_matrix(H, 2 * H))
    B = jnp.asarray(_bilinear_matrix(W, 2 * W))
    x1u = jnp.einsum('ph,nchw,qw->ncpq', A, x1, B)
    diffY = x2.shape[2] - x1u.shape[2]
    diffX = x2.shape[3] - x1u.shape[3]
    x1u = lax.pad(x1u, jnp.array(0.0, x1u.dtype),
                  [(0, 0, 0), (0, 0, 0),
                   (diffY // 2, diffY - diffY // 2, 0),
                   (diffX // 2, diffX - diffX // 2, 0)])
    x = jnp.concatenate([x2, x1u], axis=1)

    def cbr(x, w, b, g, bt, m, v):
        y = lax.conv_general_dilated(x, w, (1, 1), ((1, 1), (1, 1)),
                                     dimension_numbers=('NCHW', 'OIHW', 'NCHW'))
        y = y + b[None, :, None, None]
        y = ((y - m[None, :, None, None])
             / jnp.sqrt(v[None, :, None, None] + 1e-5)
             * g[None, :, None, None] + bt[None, :, None, None])
        return jnp.maximum(y, 0.0)

    y = cbr(x, params["w1"], params["b1"], params["bn1_gamma"],
            params["bn1_beta"], params["bn1_mean"], params["bn1_var"])
    y = cbr(y, params["w2"], params["b2"], params["bn2_gamma"],
            params["bn2_beta"], params["bn2_mean"], params["bn2_var"])
    return y


# ----------------------------------------------------------------------------
if __name__ == "__main__":
    key = jax.random.PRNGKey(0)
    k1, k2, kp = jax.random.split(key, 3)

    N = 2
    in_ch, out_ch = 8, 4            # concat of two 4-channel feature maps
    c_half = in_ch // 2
    Ht, Wt = 16, 16                 # target (x2) spatial size

    x1 = jax.random.normal(k1, (N, c_half, Ht // 2, Wt // 2), jnp.float32)
    x2 = jax.random.normal(k2, (N, c_half, Ht, Wt), jnp.float32)
    params = init_up_params(kp, in_ch, out_ch)

    y = up_forward(params, x1, x2)
    y = jax.block_until_ready(y)

    assert y.shape == (N, out_ch, Ht, Wt), y.shape
    y_ref = _ref_forward(params, x1, x2)
    if not jnp.allclose(y, y_ref, atol=1e-4, rtol=1e-4):
        raise AssertionError("Pallas result does not match JAX reference")

    print("KERNEL_OK")
</pallas_src>

<mosaic_0001>
module attributes {stable_mosaic.version = 11 : i64} {
  func.func @kernel(%arg0: i32, %arg1: memref<1x4x64xf32, #tpu.memory_space<vmem>>, %arg2: memref<1x4x288xf32, #tpu.memory_space<vmem>>, %arg3: memref<64x324xf32, #tpu.memory_space<vmem>>, %arg4: memref<1x286xf32, #tpu.memory_space<vmem>>, %arg5: memref<4x72xf32, #tpu.memory_space<vmem>>, %arg6: memref<4x1xf32, #tpu.memory_space<vmem>>, %arg7: memref<4x36xf32, #tpu.memory_space<vmem>>, %arg8: memref<4x1xf32, #tpu.memory_space<vmem>>, %arg9: memref<1x4x286xf32, #tpu.memory_space<vmem>>, %arg10: memref<8x324xf32, #tpu.memory_space<vmem>>, %arg11: memref<4x324xf32, #tpu.memory_space<vmem>>, %arg12: memref<72x286xf32, #tpu.memory_space<vmem>>, %arg13: memref<36x286xf32, #tpu.memory_space<vmem>>) attributes {dimension_semantics = [#tpu.dimension_semantics<parallel>], iteration_bounds = array<i64: 2>, scalar_prefetch = 0 : i64, scratch_operands = 4 : i64, tpu.core_type = #tpu.core_type<tc>, window_params = [{transform_indices = @transform_0, window_bounds = array<i64: 1, 4, 64>}, {transform_indices = @transform_1, window_bounds = array<i64: 1, 4, 288>}, {pipeline_mode = #tpu.pipeline_mode<synchronous>, transform_indices = @transform_2, window_bounds = array<i64: 64, 324>}, {pipeline_mode = #tpu.pipeline_mode<synchronous>, transform_indices = @transform_3, window_bounds = array<i64: 1, 286>}, {pipeline_mode = #tpu.pipeline_mode<synchronous>, transform_indices = @transform_4, window_bounds = array<i64: 4, 72>}, {pipeline_mode = #tpu.pipeline_mode<synchronous>, transform_indices = @transform_5, window_bounds = array<i64: 4, 1>}, {pipeline_mode = #tpu.pipeline_mode<synchronous>, transform_indices = @transform_6, window_bounds = array<i64: 4, 36>}, {pipeline_mode = #tpu.pipeline_mode<synchronous>, transform_indices = @transform_7, window_bounds = array<i64: 4, 1>}, {transform_indices = @transform_8, window_bounds = array<i64: 1, 4, 286>}]} {
    %cst = arith.constant 0.000000e+00 : f32
    %0 = vector.broadcast %cst : f32 to vector<8x324xf32>
    %c0 = arith.constant 0 : index
    %c0_0 = arith.constant 0 : index
    %1 = vector.load %arg10[%c0, %c0_0] : memref<8x324xf32, #tpu.memory_space<vmem>>, vector<8x324xf32>
    tpu.vector_store %arg10[%c0, %c0_0], %0 {strides = array<i32>} : memref<8x324xf32, #tpu.memory_space<vmem>>, vector<8x324xf32>,
    %c0_1 = arith.constant 0 : index
    %c0_2 = arith.constant 0 : index
    %c0_3 = arith.constant 0 : index
    %2 = vector.load %arg2[%c0_1, %c0_2, %c0_3] : memref<1x4x288xf32, #tpu.memory_space<vmem>>, vector<1x4x288xf32>
    %3 = vector.shape_cast %2 : vector<1x4x288xf32> to vector<4x288xf32>
    %c0_4 = arith.constant 0 : index
    %c18 = arith.constant 18 : index
    %4 = vector.load %arg10[%c0_4, %c18] : memref<8x324xf32, #tpu.memory_space<vmem>>, vector<4x288xf32>
    tpu.vector_store %arg10[%c0_4, %c18], %3 {strides = array<i32>} : memref<8x324xf32, #tpu.memory_space<vmem>>, vector<4x288xf32>,
    %c0_5 = arith.constant 0 : index
    %c0_6 = arith.constant 0 : index
    %c0_7 = arith.constant 0 : index
    %5 = vector.load %arg1[%c0_5, %c0_6, %c0_7] : memref<1x4x64xf32, #tpu.memory_space<vmem>>, vector<1x4x64xf32>
    %6 = vector.shape_cast %5 : vector<1x4x64xf32> to vector<4x64xf32>
    %c0_8 = arith.constant 0 : index
    %c0_9 = arith.constant 0 : index
    %7 = vector.load %arg3[%c0_8, %c0_9] : memref<64x324xf32, #tpu.memory_space<vmem>>, vector<64x324xf32>
    %cst_10 = arith.constant dense<0.000000e+00> : vector<4x324xf32>
    %8 = tpu.matmul %6, %7, %cst_10 {dimension_numbers = #tpu.dot_dimension_numbers<[1], [0], [0], [1], [0, 0, 1, 1], [], []>} : vector<4x64xf32>, vector<64x324xf32>, vector<4x324xf32> -> vector<4x324xf32>
    %c4 = arith.constant 4 : index
    %c0_11 = arith.constant 0 : index
    %9 = vector.load %arg10[%c4, %c0_11] : memref<8x324xf32, #tpu.memory_space<vmem>>, vector<4x324xf32>
    tpu.vector_store %arg10[%c4, %c0_11], %8 {strides = array<i32>} : memref<8x324xf32, #tpu.memory_space<vmem>>, vector<4x324xf32>,
    %c0_12 = arith.constant 0 : index
    %c0_13 = arith.constant 0 : index
    %10 = vector.load %arg5[%c0_12, %c0_13] : memref<4x72xf32, #tpu.memory_space<vmem>>, vector<4x72xf32>
    %c0_14 = arith.constant 0 : index
    %c0_15 = arith.constant 0 : index
    %11 = vector.load %arg6[%c0_14, %c0_15] : memref<4x1xf32, #tpu.memory_space<vmem>>, vector<4x1xf32>
    %c0_16 = arith.constant 0 : index
    %c0_17 = arith.constant 0 : index
    %12 = vector.load %arg10[%c0_16, %c0_17] : memref<8x324xf32, #tpu.memory_space<vmem>>, vector<8x286xf32>
    %c0_18 = arith.constant 0 : index
    %c0_19 = arith.constant 0 : index
    %13 = vector.load %arg12[%c0_18, %c0_19] : memref<72x286xf32, #tpu.memory_space<vmem>>, vector<8x286xf32>
    tpu.vector_store %arg12[%c0_18, %c0_19], %12 {strides = array<i32>} : memref<72x286xf32, #tpu.memory_space<vmem>>, vector<8x286xf32>,
    %c0_20 = arith.constant 0 : index
    %c1 = arith.constant 1 : index
    %14 = vector.load %arg10[%c0_20, %c1] : memref<8x324xf32, #tpu.memory_space<vmem>>, vector<8x286xf32>
    %c8 = arith.constant 8 : index
    %c0_21 = arith.constant 0 : index
    %15 = vector.load %arg12[%c8, %c0_21] : memref<72x286xf32, #tpu.memory_space<vmem>>, vector<8x286xf32>
    tpu.vector_store %arg12[%c8, %c0_21], %14 {strides = array<i32>} : memref<72x286xf32, #tpu.memory_space<vmem>>, vector<8x286xf32>,
    %c0_22 = arith.constant 0 : index
    %c2 = arith.constant 2 : index
    %16 = vector.load %arg10[%c0_22, %c2] : memref<8x324xf32, #tpu.memory_space<vmem>>, vector<8x286xf32>
    %c16 = arith.constant 16 : index
    %c0_23 = arith.constant 0 : index
    %17 = vector.load %arg12[%c16, %c0_23] : memref<72x286xf32, #tpu.memory_space<vmem>>, vector<8x286xf32>
    tpu.vector_store %arg12[%c16, %c0_23], %16 {strides = array<i32>} : memref<72x286xf32, #tpu.memory_space<vmem>>, vector<8x286xf32>,
    %c0_24 = arith.constant 0 : index
    %c18_25 = arith.constant 18 : index
    %18 = vector.load %arg10[%c0_24, %c18_25] : memref<8x324xf32, #tpu.memory_space<vmem>>, vector<8x286xf32>
    %c24 = arith.constant 24 : index
    %c0_26 = arith.constant 0 : index
    %19 = vector.load %arg12[%c24, %c0_26] : memref<72x286xf32, #tpu.memory_space<vmem>>, vector<8x286xf32>
    tpu.vector_store %arg12[%c24, %c0_26], %18 {strides = array<i32>} : memref<72x286xf32, #tpu.memory_space<vmem>>, vector<8x286xf32>,
    %c0_27 = arith.constant 0 : index
    %c19 = arith.constant 19 : index
    %20 = vector.load %arg10[%c0_27, %c19] : memref<8x324xf32, #tpu.memory_space<vmem>>, vector<8x286xf32>
    %c32 = arith.constant 32 : index
    %c0_28 = arith.constant 0 : index
    %21 = vector.load %arg12[%c32, %c0_28] : memref<72x286xf32, #tpu.memory_space<vmem>>, vector<8x286xf32>
    tpu.vector_store %arg12[%c32, %c0_28], %20 {strides = array<i32>} : memref<72x286xf32, #tpu.memory_space<vmem>>, vector<8x286xf32>,
    %c0_29 = arith.constant 0 : index
    %c20 = arith.constant 20 : index
    %22 = vector.load %arg10[%c0_29, %c20] : memref<8x324xf32, #tpu.memory_space<vmem>>, vector<8x286xf32>
    %c40 = arith.constant 40 : index
    %c0_30 = arith.constant 0 : index
    %23 = vector.load %arg12[%c40, %c0_30] : memref<72x286xf32, #tpu.memory_space<vmem>>, vector<8x286xf32>
    tpu.vector_store %arg12[%c40, %c0_30], %22 {strides = array<i32>} : memref<72x286xf32, #tpu.memory_space<vmem>>, vector<8x286xf32>,
    %c0_31 = arith.constant 0 : index
    %c36 = arith.constant 36 : index
    %24 = vector.load %arg10[%c0_31, %c36] : memref<8x324xf32, #tpu.memory_space<vmem>>, vector<8x286xf32>
    %c48 = arith.constant 48 : index
    %c0_32 = arith.constant 0 : index
    %25 = vector.load %arg12[%c48, %c0_32] : memref<72x286xf32, #tpu.memory_space<vmem>>, vector<8x286xf32>
    tpu.vector_store %arg12[%c48, %c0_32], %24 {strides = array<i32>} : memref<72x286xf32, #tpu.memory_space<vmem>>, vector<8x286xf32>,
    %c0_33 = arith.constant 0 : index
    %c37 = arith.constant 37 : index
    %26 = vector.load %arg10[%c0_33, %c37] : memref<8x324xf32, #tpu.memory_space<vmem>>, vector<8x286xf32>
    %c56 = arith.constant 56 : index
    %c0_34 = arith.constant 0 : index
    %27 = vector.load %arg12[%c56, %c0_34] : memref<72x286xf32, #tpu.memory_space<vmem>>, vector<8x286xf32>
    tpu.vector_store %arg12[%c56, %c0_34], %26 {strides = array<i32>} : memref<72x286xf32, #tpu.memory_space<vmem>>, vector<8x286xf32>,
    %c0_35 = arith.constant 0 : index
    %c38 = arith.constant 38 : index
    %28 = vector.load %arg10[%c0_35, %c38] : memref<8x324xf32, #tpu.memory_space<vmem>>, vector<8x286xf32>
    %c64 = arith.constant 64 : index
    %c0_36 = arith.constant 0 : index
    %29 = vector.load %arg12[%c64, %c0_36] : memref<72x286xf32, #tpu.memory_space<vmem>>, vector<8x286xf32>
    tpu.vector_store %arg12[%c64, %c0_36], %28 {strides = array<i32>} : memref<72x286xf32, #tpu.memory_space<vmem>>, vector<8x286xf32>,
    %c0_37 = arith.constant 0 : index
    %c0_38 = arith.constant 0 : index
    %30 = vector.load %arg12[%c0_37, %c0_38] : memref<72x286xf32, #tpu.memory_space<vmem>>, vector<72x286xf32>
    %cst_39 = arith.constant dense<0.000000e+00> : vector<4x286xf32>
    %31 = tpu.matmul %10, %30, %cst_39 {dimension_numbers = #tpu.dot_dimension_numbers<[1], [0], [0], [1], [0, 0, 1, 1], [], []>} : vector<4x72xf32>, vector<72x286xf32>, vector<4x286xf32> -> vector<4x286xf32>
    %32 = vector.broadcast %11 : vector<4x1xf32> to vector<4x286xf32>
    %33 = arith.addf %31, %32 : vector<4x286xf32>
    %cst_40 = arith.constant 0.000000e+00 : f32
    %34 = vector.broadcast %cst_40 : f32 to vector<4x286xf32>
    %35 = arith.maximumf %33, %34 : vector<4x286xf32>
    %c0_41 = arith.constant 0 : index
    %c0_42 = arith.constant 0 : index
    %36 = vector.load %arg4[%c0_41, %c0_42] : memref<1x286xf32, #tpu.memory_space<vmem>>, vector<1x286xf32>
    %37 = vector.broadcast %36 : vector<1x286xf32> to vector<4x286xf32>
    %38 = arith.mulf %35, %37 : vector<4x286xf32>
    %cst_43 = arith.constant 0.000000e+00 : f32
    %39 = vector.broadcast %cst_43 : f32 to vector<4x324xf32>
    %c0_44 = arith.constant 0 : index
    %c0_45 = arith.constant 0 : index
    %40 = vector.load %arg11[%c0_44, %c0_45] : memref<4x324xf32, #tpu.memory_space<vmem>>, vector<4x324xf32>
    tpu.vector_store %arg11[%c0_44, %c0_45], %39 {strides = array<i32>} : memref<4x324xf32, #tpu.memory_space<vmem>>, vector<4x324xf32>,
    %c0_46 = arith.constant 0 : index
    %c19_47 = arith.constant 19 : index
    %41 = vector.load %arg11[%c0_46, %c19_47] : memref<4x324xf32, #tpu.memory_space<vmem>>, vector<4x286xf32>
    tpu.vector_store %arg11[%c0_46, %c19_47], %38 {strides = array<i32>} : memref<4x324xf32, #tpu.memory_space<vmem>>, vector<4x286xf32>,
    %c0_48 = arith.constant 0 : index
    %c0_49 = arith.constant 0 : index
    %42 = vector.load %arg7[%c0_48, %c0_49] : memref<4x36xf32, #tpu.memory_space<vmem>>, vector<4x36xf32>
    %c0_50 = arith.constant 0 : index
    %c0_51 = arith.constant 0 : index
    %43 = vector.load %arg8[%c0_50, %c0_51] : memref<4x1xf32, #tpu.memory_space<vmem>>, vector<4x1xf32>
    %c0_52 = arith.constant 0 : index
    %c0_53 = arith.constant 0 : index
    %44 = vector.load %arg11[%c0_52, %c0_53] : memref<4x324xf32, #tpu.memory_space<vmem>>, vector<4x286xf32>
    %c0_54 = arith.constant 0 : index
    %c0_55 = arith.constant 0 : index
    %45 = vector.load %arg13[%c0_54, %c0_55] : memref<36x286xf32, #tpu.memory_space<vmem>>, vector<4x286xf32>
    tpu.vector_store %arg13[%c0_54, %c0_55], %44 {strides = array<i32>} : memref<36x286xf32, #tpu.memory_space<vmem>>, vector<4x286xf32>,
    %c0_56 = arith.constant 0 : index
    %c1_57 = arith.constant 1 : index
    %46 = vector.load %arg11[%c0_56, %c1_57] : memref<4x324xf32, #tpu.memory_space<vmem>>, vector<4x286xf32>
    %c4_58 = arith.constant 4 : index
    %c0_59 = arith.constant 0 : index
    %47 = vector.load %arg13[%c4_58, %c0_59] : memref<36x286xf32, #tpu.memory_space<vmem>>, vector<4x286xf32>
    tpu.vector_store %arg13[%c4_58, %c0_59], %46 {strides = array<i32>} : memref<36x286xf32, #tpu.memory_space<vmem>>, vector<4x286xf32>,
    %c0_60 = arith.constant 0 : index
    %c2_61 = arith.constant 2 : index
    %48 = vector.load %arg11[%c0_60, %c2_61] : memref<4x324xf32, #tpu.memory_space<vmem>>, vector<4x286xf32>
    %c8_62 = arith.constant 8 : index
    %c0_63 = arith.constant 0 : index
    %49 = vector.load %arg13[%c8_62, %c0_63] : memref<36x286xf32, #tpu.memory_space<vmem>>, vector<4x286xf32>
    tpu.vector_store %arg13[%c8_62, %c0_63], %48 {strides = array<i32>} : memref<36x286xf32, #tpu.memory_space<vmem>>, vector<4x286xf32>,
    %c0_64 = arith.constant 0 : index
    %c18_65 = arith.constant 18 : index
    %50 = vector.load %arg11[%c0_64, %c18_65] : memref<4x324xf32, #tpu.memory_space<vmem>>, vector<4x286xf32>
    %c12 = arith.constant 12 : index
    %c0_66 = arith.constant 0 : index
    %51 = vector.load %arg13[%c12, %c0_66] : memref<36x286xf32, #tpu.memory_space<vmem>>, vector<4x286xf32>
    tpu.vector_store %arg13[%c12, %c0_66], %50 {strides = array<i32>} : memref<36x286xf32, #tpu.memory_space<vmem>>, vector<4x286xf32>,
    %c0_67 = arith.constant 0 : index
    %c19_68 = arith.constant 19 : index
    %52 = vector.load %arg11[%c0_67, %c19_68] : memref<4x324xf32, #tpu.memory_space<vmem>>, vector<4x286xf32>
    %c16_69 = arith.constant 16 : index
    %c0_70 = arith.constant 0 : index
    %53 = vector.load %arg13[%c16_69, %c0_70] : memref<36x286xf32, #tpu.memory_space<vmem>>, vector<4x286xf32>
    tpu.vector_store %arg13[%c16_69, %c0_70], %52 {strides = array<i32>} : memref<36x286xf32, #tpu.memory_space<vmem>>, vector<4x286xf32>,
    %c0_71 = arith.constant 0 : index
    %c20_72 = arith.constant 20 : index
    %54 = vector.load %arg11[%c0_71, %c20_72] : memref<4x324xf32, #tpu.memory_space<vmem>>, vector<4x286xf32>
    %c20_73 = arith.constant 20 : index
    %c0_74 = arith.constant 0 : index
    %55 = vector.load %arg13[%c20_73, %c0_74] : memref<36x286xf32, #tpu.memory_space<vmem>>, vector<4x286xf32>
    tpu.vector_store %arg13[%c20_73, %c0_74], %54 {strides = array<i32>} : memref<36x286xf32, #tpu.memory_space<vmem>>, vector<4x286xf32>,
    %c0_75 = arith.constant 0 : index
    %c36_76 = arith.constant 36 : index
    %56 = vector.load %arg11[%c0_75, %c36_76] : memref<4x324xf32, #tpu.memory_space<vmem>>, vector<4x286xf32>
    %c24_77 = arith.constant 24 : index
    %c0_78 = arith.constant 0 : index
    %57 = vector.load %arg13[%c24_77, %c0_78] : memref<36x286xf32, #tpu.memory_space<vmem>>, vector<4x286xf32>
    tpu.vector_store %arg13[%c24_77, %c0_78], %56 {strides = array<i32>} : memref<36x286xf32, #tpu.memory_space<vmem>>, vector<4x286xf32>,
    %c0_79 = arith.constant 0 : index
    %c37_80 = arith.constant 37 : index
    %58 = vector.load %arg11[%c0_79, %c37_80] : memref<4x324xf32, #tpu.memory_space<vmem>>, vector<4x286xf32>
    %c28 = arith.constant 28 : index
    %c0_81 = arith.constant 0 : index
    %59 = vector.load %arg13[%c28, %c0_81] : memref<36x286xf32, #tpu.memory_space<vmem>>, vector<4x286xf32>
    tpu.vector_store %arg13[%c28, %c0_81], %58 {strides = array<i32>} : memref<36x286xf32, #tpu.memory_space<vmem>>, vector<4x286xf32>,
    %c0_82 = arith.constant 0 : index
    %c38_83 = arith.constant 38 : index
    %60 = vector.load %arg11[%c0_82, %c38_83] : memref<4x324xf32, #tpu.memory_space<vmem>>, vector<4x286xf32>
    %c32_84 = arith.constant 32 : index
    %c0_85 = arith.constant 0 : index
    %61 = vector.load %arg13[%c32_84, %c0_85] : memref<36x286xf32, #tpu.memory_space<vmem>>, vector<4x286xf32>
    tpu.vector_store %arg13[%c32_84, %c0_85], %60 {strides = array<i32>} : memref<36x286xf32, #tpu.memory_space<vmem>>, vector<4x286xf32>,
    %c0_86 = arith.constant 0 : index
    %c0_87 = arith.constant 0 : index
    %62 = vector.load %arg13[%c0_86, %c0_87] : memref<36x286xf32, #tpu.memory_space<vmem>>, vector<36x286xf32>
    %cst_88 = arith.constant dense<0.000000e+00> : vector<4x286xf32>
    %63 = tpu.matmul %42, %62, %cst_88 {dimension_numbers = #tpu.dot_dimension_numbers<[1], [0], [0], [1], [0, 0, 1, 1], [], []>} : vector<4x36xf32>, vector<36x286xf32>, vector<4x286xf32> -> vector<4x286xf32>
    %64 = vector.broadcast %43 : vector<4x1xf32> to vector<4x286xf32>
    %65 = arith.addf %63, %64 : vector<4x286xf32>
    %cst_89 = arith.constant 0.000000e+00 : f32
    %66 = vector.broadcast %cst_89 : f32 to vector<4x286xf32>
    %67 = arith.maximumf %65, %66 : vector<4x286xf32>
    %c0_90 = arith.constant 0 : index
    %c0_91 = arith.constant 0 : index
    %c0_92 = arith.constant 0 : index
    %68 = vector.load %arg9[%c0_90, %c0_91, %c0_92] : memref<1x4x286xf32, #tpu.memory_space<vmem>>, vector<1x4x286xf32>
    %69 = vector.shape_cast %68 : vector<1x4x286xf32> to vector<4x286xf32>
    %70 = vector.shape_cast %67 : vector<4x286xf32> to vector<1x4x286xf32>
    tpu.vector_store %arg9[%c0_90, %c0_91, %c0_92], %70 {strides = array<i32>} : memref<1x4x286xf32, #tpu.memory_space<vmem>>, vector<1x4x286xf32>,
    return
  }
  func.func @transform_0(%arg0: i32) -> (i32, i32, i32) {
    %c0_i32 = arith.constant 0 : i32
    %c0_i32_0 = arith.constant 0 : i32
    %c0_i32_1 = arith.constant 0 : i32
    return %arg0, %c0_i32, %c0_i32_0 : i32, i32, i32
  }
  func.func @transform_1(%arg0: i32) -> (i32, i32, i32) {
    %c0_i32 = arith.constant 0 : i32
    %c0_i32_0 = arith.constant 0 : i32
    %c0_i32_1 = arith.constant 0 : i32
    return %arg0, %c0_i32, %c0_i32_0 : i32, i32, i32
  }
  func.func @transform_2(%arg0: i32) -> (i32, i32) {
    %c0_i32 = arith.constant 0 : i32
    %c0_i32_0 = arith.constant 0 : i32
    %c0_i32_1 = arith.constant 0 : i32
    return %c0_i32, %c0_i32_0 : i32, i32
  }
  func.func @transform_3(%arg0: i32) -> (i32, i32) {
    %c0_i32 = arith.constant 0 : i32
    %c0_i32_0 = arith.constant 0 : i32
    %c0_i32_1 = arith.constant 0 : i32
    return %c0_i32, %c0_i32_0 : i32, i32
  }
  func.func @transform_4(%arg0: i32) -> (i32, i32) {
    %c0_i32 = arith.constant 0 : i32
    %c0_i32_0 = arith.constant 0 : i32
    %c0_i32_1 = arith.constant 0 : i32
    return %c0_i32, %c0_i32_0 : i32, i32
  }
  func.func @transform_5(%arg0: i32) -> (i32, i32) {
    %c0_i32 = arith.constant 0 : i32
    %c0_i32_0 = arith.constant 0 : i32
    %c0_i32_1 = arith.constant 0 : i32
    return %c0_i32, %c0_i32_0 : i32, i32
  }
  func.func @transform_6(%arg0: i32) -> (i32, i32) {
    %c0_i32 = arith.constant 0 : i32
    %c0_i32_0 = arith.constant 0 : i32
    %c0_i32_1 = arith.constant 0 : i32
    return %c0_i32, %c0_i32_0 : i32, i32
  }
  func.func @transform_7(%arg0: i32) -> (i32, i32) {
    %c0_i32 = arith.constant 0 : i32
    %c0_i32_0 = arith.constant 0 : i32
    %c0_i32_1 = arith.constant 0 : i32
    return %c0_i32, %c0_i32_0 : i32, i32
  }
  func.func @transform_8(%arg0: i32) -> (i32, i32, i32) {
    %c0_i32 = arith.constant 0 : i32
    %c0_i32_0 = arith.constant 0 : i32
    %c0_i32_1 = arith.constant 0 : i32
    return %arg0, %c0_i32, %c0_i32_0 : i32, i32, i32
  }
}

</mosaic_0001>

<llo_original>
// kernel: tpu_custom_call.1
$region0: #{tpu_custom_call.1}
  #allocation0 [shape = 'u32[]', space=smem, size = 0x4, offset = 0x4, fixed_abs, tag = 'smem constant byte address 0x4 - core index']
  #allocation1 [shape = 'u32[144,128]{1,0:T(1,128)}', space=vmem, size = 0x12000, scoped, tag = 'internal scratch']
  #allocation2 [shape = 'f32[8,324]{1,0:T(8,128)}', space=vmem, size = 0x3000, scoped, tag = 'scratch operand']
  #allocation3 [shape = 'f32[4,324]{1,0:T(4,128)}', space=vmem, size = 0x1800, scoped, tag = 'scratch operand']
  #allocation4 [shape = 'f32[72,286]{1,0:T(8,128)}', space=vmem, size = 0x1b000, scoped, tag = 'scratch operand']
  #allocation5 [shape = 'f32[36,286]{1,0:T(8,128)}', space=vmem, size = 0xf000, scoped, tag = 'scratch operand']
  %s0 = inlined_call_operand.vmem [shape: f32[2,4,64], index: 0, kind: input, shape index: {}]
  %s1 = inlined_call_operand.hbm [shape: f32[2,4,288], index: 1, kind: input, shape index: {}]
  %s2 = inlined_call_operand.hbm [shape: f32[64,324], index: 2, kind: input, shape index: {}]
  %s3 = inlined_call_operand.vmem [shape: f32[1,286], index: 3, kind: input, shape index: {}]
  %s4 = inlined_call_operand.vmem [shape: f32[4,72], index: 4, kind: input, shape index: {}]
  %s5 = inlined_call_operand.vmem [shape: f32[4,1], index: 5, kind: input, shape index: {}]
  %s6 = inlined_call_operand.vmem [shape: f32[4,36], index: 6, kind: input, shape index: {}]
  %s7 = inlined_call_operand.vmem [shape: f32[4,1], index: 7, kind: input, shape index: {}]
  %s8 = inlined_call_operand.hbm [shape: f32[2,4,286], index: 8, kind: output, shape index: {}]
  %s9 = sld [smem:[#allocation0]]
  $region73: #{tpu_custom_call.1} parent=0
    _
  %s11 = ssub.s32 1, %s9
  %s12 = scalar_select 0, %s11, %s9
  $region1: #{tpu_custom_call.1} parent=0
    #allocation6 [shape = 'u8[12288]{0}', space=vmem, size = 0x3000, scoped, tag = 'input window, operand 1']
    #allocation7 [shape = 's32[2]{0}', space=sflag, size = 0x8, scoped, tag = 'scoped memory for tpu_custom_call.1']
    #allocation8 [shape = 's32[2]{0}', space=sflag, size = 0x8, scoped, tag = 'scoped memory for tpu_custom_call.1']
    #allocation9 [shape = 'u8[98304]{0}', space=vmem, size = 0x18000, scoped, tag = 'input window, operand 2, single buffered']
    #allocation10 [shape = 's32[1]{0}', space=sflag, size = 0x4, scoped, tag = 'scoped memory for tpu_custom_call.1']
    #allocation11 [shape = 'u8[12288]{0}', space=vmem, size = 0x3000, scoped, tag = 'output window, operand 0']
    %13 = vsyncpa [#allocation7], 0
    %s14 = scalar_lea.sflag [#allocation7], 1
    %15 = vsyncpa %s14, 0
    %16 = vsyncpa [#allocation10], 0
    %17 = vsyncpa [#allocation8], 0
    %s18 = scalar_lea.sflag [#allocation8], 1
    %19 = vsyncpa %s18, 0
    loop: start=0, step=1, limit=4
    $region2: #{tpu_custom_call.1} parent=1 // loop_pre_header
      _
    $region3: #{tpu_custom_call.1} parent=1 // loop_header
      %s21 = sphi 0, %s25
      %p22 = scmp.ge.s32.totalorder %s21, 4
      %s31 = sphi 0, %s33
      %s34 = sphi 0, %s31
      %s35 = sphi 0, %s34
      %s51 = sphi 0, %s35
      %s57 = sphi 0, %s59
      %s60 = sphi 0, %s57
      %s61 = sphi 0, %s60
      %s77 = sphi 0, %s61
      %s81 = sphi 0, %s81
      %s83 = sphi 0, %s81
      %s84 = sphi 0, %s83
      %s98 = sphi 0, %s84
      %s102 = sphi 0, %s102
      %s104 = sphi 0, %s102
      %s105 = sphi 0, %s104
      %s119 = sphi 0, %s105
      %s123 = sphi 0, %s123
      %s125 = sphi 0, %s123
      %s126 = sphi 0, %s125
      %s140 = sphi 0, %s126
      %s144 = sphi 0, %s144
      %s146 = sphi 0, %s144
      %s147 = sphi 0, %s146
      %s161 = sphi 0, %s147
      %s165 = sphi 0, %s165
      %s167 = sphi 0, %s165
      %s168 = sphi 0, %s167
      %s182 = sphi 0, %s168
      %s186 = sphi 0, %s186
      %s188 = sphi 0, %s186
      %s189 = sphi 0, %s188
      %s203 = sphi 0, %s189
      %s209 = sphi 0, %s211
      %s212 = sphi 0, %s209
      %s213 = sphi 0, %s212
      %s229 = sphi 0, %s213
    $region4: #{tpu_custom_call.1} parent=1 // loop_header_branch
      %24 = sbr.rel (%p22) target = $region8
    $region5: #{tpu_custom_call.1} parent=1 // loop_body
      %s26 = ssub.s32 %s21, 1
      %s27 = ssub.s32 %s21, 2
      %s28 = sadd.s32 %s21, 1
      %s29 = ssub.s32 %s21, %s28
      %p30 = scmp.eq.s32.totalorder %s29, 0
      %s32 = sadd.s32 %s31, 1
      %s33 = scalar_select %p30, %s31, %s32
      %p36 = pneg %p30
      %p37 = scmp.eq.s32.totalorder %s21, 1
      %p38 = por %p36, %p37
      %p39 = scmp.ne.s32.totalorder %s31, %s34
      %p40 = scmp.eq.s32.totalorder %s21, 0
      %p41 = por %p39, %p40
      %p42 = scmp.ne.s32.totalorder %s31, %s34
      %p43 = scmp.eq.s32.totalorder %s26, 1
      %p44 = por %p42, %p43
      %p45 = scmp.ne.s32.totalorder %s34, %s35
      %p46 = scmp.eq.s32.totalorder %s26, 0
      %p47 = por %p45, %p46
      %p48 = scmp.ne.s32.totalorder %s34, %s35
      %p49 = scmp.eq.s32.totalorder %s27, 1
      %p50 = por %p48, %p49
      %p52 = scmp.ne.s32.totalorder %s35, %s51
      %p53 = scmp.eq.s32.totalorder %s27, 0
      %p54 = por %p52, %p53
      %s55 = ssub.s32 %s21, %s28
      %p56 = scmp.eq.s32.totalorder %s55, 0
      %s58 = sadd.s32 %s57, 1
      %s59 = scalar_select %p56, %s57, %s58
      %p62 = pneg %p56
      %p63 = scmp.eq.s32.totalorder %s21, 1
      %p64 = por %p62, %p63
      %p65 = scmp.ne.s32.totalorder %s57, %s60
      %p66 = scmp.eq.s32.totalorder %s21, 0
      %p67 = por %p65, %p66
      %p68 = scmp.ne.s32.totalorder %s57, %s60
      %p69 = scmp.eq.s32.totalorder %s26, 1
      %p70 = por %p68, %p69
      %p71 = scmp.ne.s32.totalorder %s60, %s61
      %p72 = scmp.eq.s32.totalorder %s26, 0
      %p73 = por %p71, %p72
      %p74 = scmp.ne.s32.totalorder %s60, %s61
      %p75 = scmp.eq.s32.totalorder %s27, 1
      %p76 = por %p74, %p75
      %p78 = scmp.ne.s32.totalorder %s61, %s77
      %p79 = scmp.eq.s32.totalorder %s27, 0
      %p80 = por %p78, %p79
      %s82 = sadd.s32 %s81, 1
      %p85 = scmp.eq.s32.totalorder %s21, 1
      %p86 = scmp.ne.s32.totalorder %s81, %s83
      %p87 = scmp.eq.s32.totalorder %s21, 0
      %p88 = por %p86, %p87
      %p89 = scmp.ne.s32.totalorder %s81, %s83
      %p90 = scmp.eq.s32.totalorder %s26, 1
      %p91 = por %p89, %p90
      %p92 = scmp.ne.s32.totalorder %s83, %s84
      %p93 = scmp.eq.s32.totalorder %s26, 0
      %p94 = por %p92, %p93
      %p95 = scmp.ne.s32.totalorder %s83, %s84
      %p96 = scmp.eq.s32.totalorder %s27, 1
      %p97 = por %p95, %p96
      %p99 = scmp.ne.s32.totalorder %s84, %s98
      %p100 = scmp.eq.s32.totalorder %s27, 0
      %p101 = por %p99, %p100
      %s103 = sadd.s32 %s102, 1
      %p106 = scmp.eq.s32.totalorder %s21, 1
      %p107 = scmp.ne.s32.totalorder %s102, %s104
      %p108 = scmp.eq.s32.totalorder %s21, 0
      %p109 = por %p107, %p108
      %p110 = scmp.ne.s32.totalorder %s102, %s104
      %p111 = scmp.eq.s32.totalorder %s26, 1
      %p112 = por %p110, %p111
      %p113 = scmp.ne.s32.totalorder %s104, %s105
      %p114 = scmp.eq.s32.totalorder %s26, 0
      %p115 = por %p113, %p114
      %p116 = scmp.ne.s32.totalorder %s104, %s105
      %p117 = scmp.eq.s32.totalorder %s27, 1
      %p118 = por %p116, %p117
      %p120 = scmp.ne.s32.totalorder %s105, %s119
      %p121 = scmp.eq.s32.totalorder %s27, 0
      %p122 = por %p120, %p121
      %s124 = sadd.s32 %s123, 1
      %p127 = scmp.eq.s32.totalorder %s21, 1
      %p128 = scmp.ne.s32.totalorder %s123, %s125
      %p129 = scmp.eq.s32.totalorder %s21, 0
      %p130 = por %p128, %p129
      %p131 = scmp.ne.s32.totalorder %s123, %s125
      %p132 = scmp.eq.s32.totalorder %s26, 1
      %p133 = por %p131, %p132
      %p134 = scmp.ne.s32.totalorder %s125, %s126
      %p135 = scmp.eq.s32.totalorder %s26, 0
      %p136 = por %p134, %p135
      %p137 = scmp.ne.s32.totalorder %s125, %s126
      %p138 = scmp.eq.s32.totalorder %s27, 1
      %p139 = por %p137, %p138
      %p141 = scmp.ne.s32.totalorder %s126, %s140
      %p142 = scmp.eq.s32.totalorder %s27, 0
      %p143 = por %p141, %p142
      %s145 = sadd.s32 %s144, 1
      %p148 = scmp.eq.s32.totalorder %s21, 1
      %p149 = scmp.ne.s32.totalorder %s144, %s146
      %p150 = scmp.eq.s32.totalorder %s21, 0
      %p151 = por %p149, %p150
      %p152 = scmp.ne.s32.totalorder %s144, %s146
      %p153 = scmp.eq.s32.totalorder %s26, 1
      %p154 = por %p152, %p153
      %p155 = scmp.ne.s32.totalorder %s146, %s147
      %p156 = scmp.eq.s32.totalorder %s26, 0
      %p157 = por %p155, %p156
      %p158 = scmp.ne.s32.totalorder %s146, %s147
      %p159 = scmp.eq.s32.totalorder %s27, 1
      %p160 = por %p158, %p159
      %p162 = scmp.ne.s32.totalorder %s147, %s161
      %p163 = scmp.eq.s32.totalorder %s27, 0
      %p164 = por %p162, %p163
      %s166 = sadd.s32 %s165, 1
      %p169 = scmp.eq.s32.totalorder %s21, 1
      %p170 = scmp.ne.s32.totalorder %s165, %s167
      %p171 = scmp.eq.s32.totalorder %s21, 0
      %p172 = por %p170, %p171
      %p173 = scmp.ne.s32.totalorder %s165, %s167
      %p174 = scmp.eq.s32.totalorder %s26, 1
      %p175 = por %p173, %p174
      %p176 = scmp.ne.s32.totalorder %s167, %s168
      %p177 = scmp.eq.s32.totalorder %s26, 0
      %p178 = por %p176, %p177
      %p179 = scmp.ne.s32.totalorder %s167, %s168
      %p180 = scmp.eq.s32.totalorder %s27, 1
      %p181 = por %p179, %p180
      %p183 = scmp.ne.s32.totalorder %s168, %s182
      %p184 = scmp.eq.s32.totalorder %s27, 0
      %p185 = por %p183, %p184
      %s187 = sadd.s32 %s186, 1
      %p190 = scmp.eq.s32.totalorder %s21, 1
      %p191 = scmp.ne.s32.totalorder %s186, %s188
      %p192 = scmp.eq.s32.totalorder %s21, 0
      %p193 = por %p191, %p192
      %p194 = scmp.ne.s32.totalorder %s186, %s188
      %p195 = scmp.eq.s32.totalorder %s26, 1
      %p196 = por %p194, %p195
      %p197 = scmp.ne.s32.totalorder %s188, %s189
      %p198 = scmp.eq.s32.totalorder %s26, 0
      %p199 = por %p197, %p198
      %p200 = scmp.ne.s32.totalorder %s188, %s189
      %p201 = scmp.eq.s32.totalorder %s27, 1
      %p202 = por %p200, %p201
      %p204 = scmp.ne.s32.totalorder %s189, %s203
      %p205 = scmp.eq.s32.totalorder %s27, 0
      %p206 = por %p204, %p205
      %s207 = ssub.s32 %s21, %s28
      %p208 = scmp.eq.s32.totalorder %s207, 0
      %s210 = sadd.s32 %s209, 1
      %s211 = scalar_select %p208, %s209, %s210
      %p214 = pneg %p208
      %p215 = scmp.eq.s32.totalorder %s21, 1
      %p216 = por %p214, %p215
      %p217 = scmp.ne.s32.totalorder %s209, %s212
      %p218 = scmp.eq.s32.totalorder %s21, 0
      %p219 = por %p217, %p218
      %p220 = scmp.ne.s32.totalorder %s209, %s212
      %p221 = scmp.eq.s32.totalorder %s26, 1
      %p222 = por %p220, %p221
      %p223 = scmp.ne.s32.totalorder %s212, %s213
      %p224 = scmp.eq.s32.totalorder %s26, 0
      %p225 = por %p223, %p224
      %p226 = scmp.ne.s32.totalorder %s212, %s213
      %p227 = scmp.eq.s32.totalorder %s27, 1
      %p228 = por %p226, %p227
      %p230 = scmp.ne.s32.totalorder %s213, %s229
      %p231 = scmp.eq.s32.totalorder %s27, 0
      %p232 = por %p230, %p231
      %p233 = scmp.le.s32.totalorder 1, %s21
      %p234 = scmp.lt.s32.totalorder %s21, 3
      %p235 = pnand %p233, %p234
      %p236 = pneg %p235
      // Predicated region
      $region9: #{tpu_custom_call.1} parent=5 // pred_check
        _
      $region10: #{tpu_custom_call.1} parent=5 // pred_check_branch
        %238 = sbr.rel (%p235) target = $region12
      $region11: #{tpu_custom_call.1} parent=5 // pred_region
        %s239 = ssub.s32 %s21, 1
        // Predicated region
        $region13: #{tpu_custom_call.1} parent=11 // pred_check
          %p240 = pneg %p94
        $region14: #{tpu_custom_call.1} parent=11 // pred_check_branch
          %242 = sbr.rel (%p240) target = $region16
        $region15: #{tpu_custom_call.1} parent=11 // pred_region
          %s244 = ssub.s32 3072, 3072
          %245 = vsyncadd [#allocation10], %s244
          %s246 = sshll.u32 [#allocation9], 4
          %s247 = int_to_ptr.vmem [resolvable:$true] %s246
          %252 = dma.hbm_to_vmem [thread:$0]  %s2, 3072, %s247, [#allocation10], 384, 384, 24
        $region16: #{tpu_custom_call.1} parent=11 // pred_fallthru
          _
        // Predicated region
        $region17: #{tpu_custom_call.1} parent=11 // pred_check
          %p253 = pneg %p115
        $region18: #{tpu_custom_call.1} parent=11 // pred_check_branch
          %255 = sbr.rel (%p253) target = $region20
        $region19: #{tpu_custom_call.1} parent=11 // pred_region
          _
        $region20: #{tpu_custom_call.1} parent=11 // pred_fallthru
          _
        // Predicated region
        $region21: #{tpu_custom_call.1} parent=11 // pred_check
          %p256 = pneg %p136
        $region22: #{tpu_custom_call.1} parent=11 // pred_check_branch
          %258 = sbr.rel (%p256) target = $region24
        $region23: #{tpu_custom_call.1} parent=11 // pred_region
          _
        $region24: #{tpu_custom_call.1} parent=11 // pred_fallthru
          _
        // Predicated region
        $region25: #{tpu_custom_call.1} parent=11 // pred_check
          %p259 = pneg %p157
        $region26: #{tpu_custom_call.1} parent=11 // pred_check_branch
          %261 = sbr.rel (%p259) target = $region28
        $region27: #{tpu_custom_call.1} parent=11 // pred_region
          _
        $region28: #{tpu_custom_call.1} parent=11 // pred_fallthru
          _
        // Predicated region
        $region29: #{tpu_custom_call.1} parent=11 // pred_check
          %p262 = pneg %p178
        $region30: #{tpu_custom_call.1} parent=11 // pred_check_branch
          %264 = sbr.rel (%p262) target = $region32
        $region31: #{tpu_custom_call.1} parent=11 // pred_region
          _
        $region32: #{tpu_custom_call.1} parent=11 // pred_fallthru
          _
        // Predicated region
        $region33: #{tpu_custom_call.1} parent=11 // pred_check
          %p265 = pneg %p199
        $region34: #{tpu_custom_call.1} parent=11 // pred_check_branch
          %267 = sbr.rel (%p265) target = $region36
        $region35: #{tpu_custom_call.1} parent=11 // pred_region
          _
        $region36: #{tpu_custom_call.1} parent=11 // pred_fallthru
          _
      $region12: #{tpu_custom_call.1} parent=5 // pred_fallthru
        _
      %p268 = scmp.lt.s32.totalorder %s21, 2
      // Predicated region
      $region37: #{tpu_custom_call.1} parent=5 // pred_check
        %p269 = pneg %p268
      $region38: #{tpu_custom_call.1} parent=5 // pred_check_branch
        %271 = sbr.rel (%p269) target = $region40
      $region39: #{tpu_custom_call.1} parent=5 // pred_region
        // Predicated region
        $region41: #{tpu_custom_call.1} parent=39 // pred_check
          %p272 = pneg %p41
        $region42: #{tpu_custom_call.1} parent=39 // pred_check_branch
          %274 = sbr.rel (%p272) target = $region44
        $region43: #{tpu_custom_call.1} parent=39 // pred_region
          %p275 = scmp.lt.s32.totalorder %s21, 1
          %s276 = scalar_select %p275, %s21, 1
          %s277 = smul.addr %s276, 4
          %s278 = scalar_lea.vmem %s0, %s277
        $region44: #{tpu_custom_call.1} parent=39 // pred_fallthru
          _
        // Predicated region
        $region45: #{tpu_custom_call.1} parent=39 // pred_check
          %p279 = pneg %p67
        $region46: #{tpu_custom_call.1} parent=39 // pred_check_branch
          %281 = sbr.rel (%p279) target = $region48
        $region47: #{tpu_custom_call.1} parent=39 // pred_region
          %s282 = sand.u32 %s57, 1
          %s283 = scalar_lea.sflag [#allocation7], %s282
          %s284 = sand.u32 %s57, 1
          %s285 = smul.addr %s284, 12
          %s286 = scalar_lea.vmem [#allocation6], %s285
          %s288 = ssub.s32 192, 192
          %289 = vsyncadd %s283, %s288
          %s290 = smul.addr %s21, 3
          %s291 = smul.addr %s290, 64
          %s292 = scalar_lea.hbm %s1, %s291
          %s294 = sshll.u32 %s286, 4
          %s295 = int_to_ptr.vmem [resolvable:$true] %s294
          %297 = dma.hbm_to_vmem [thread:$0]  %s292, 192, %s295, %s283
        $region48: #{tpu_custom_call.1} parent=39 // pred_fallthru
          _
      $region40: #{tpu_custom_call.1} parent=5 // pred_fallthru
        _
      %p298 = scmp.le.s32.totalorder 1, %s21
      %p299 = scmp.lt.s32.totalorder %s21, 3
      %p300 = pnand %p298, %p299
      %p301 = pneg %p300
      // Predicated region
      $region49: #{tpu_custom_call.1} parent=5 // pred_check
        _
      $region50: #{tpu_custom_call.1} parent=5 // pred_check_branch
        %303 = sbr.rel (%p300) target = $region52
      $region51: #{tpu_custom_call.1} parent=5 // pred_region
        %s304 = ssub.s32 %s21, 1
        %s305 = sand.u32 %s60, 1
        %s306 = scalar_lea.sflag [#allocation7], %s305
        %s307 = sand.u32 %s60, 1
        %s308 = smul.addr %s307, 12
        %s309 = scalar_lea.vmem [#allocation6], %s308
        // Predicated region
        $region53: #{tpu_custom_call.1} parent=51 // pred_check
          %p310 = pneg %p73
        $region54: #{tpu_custom_call.1} parent=51 // pred_check_branch
          %312 = sbr.rel (%p310) target = $region56
        $region55: #{tpu_custom_call.1} parent=51 // pred_region
          %313 = dma.done %s306, 192
        $region56: #{tpu_custom_call.1} parent=51 // pred_fallthru
          _
        // Predicated region
        $region57: #{tpu_custom_call.1} parent=51 // pred_check
          %p314 = pneg %p94
        $region58: #{tpu_custom_call.1} parent=51 // pred_check_branch
          %316 = sbr.rel (%p314) target = $region60
        $region59: #{tpu_custom_call.1} parent=51 // pred_region
          %317 = dma.done [#allocation10], 3072
        $region60: #{tpu_custom_call.1} parent=51 // pred_fallthru
          _
        %p318 = scmp.lt.s32.totalorder %s26, 1
        %s319 = scalar_select %p318, %s26, 1
        %s320 = smul.addr %s319, 4
        %s321 = scalar_lea.vmem %s0, %s320
        %p322 = pneg %p47
        %p323 = pneg %p44
        %s324 = sand.u32 %s60, 1
        %s325 = scalar_lea.sflag [#allocation7], %s324
        %s326 = sand.u32 %s60, 1
        %s327 = smul.addr %s326, 12
        %s328 = scalar_lea.vmem [#allocation6], %s327
        %p329 = pneg %p73
        %p330 = pneg %p70
        %p331 = pneg %p94
        %p332 = pneg %p91
        %p333 = pneg %p115
        %p334 = pneg %p112
        %p335 = pneg %p136
        %p336 = pneg %p133
        %p337 = pneg %p157
        %p338 = pneg %p154
        %p339 = pneg %p178
        %p340 = pneg %p175
        %p341 = pneg %p199
        %p342 = pneg %p196
        %p343 = pneg %p225
        %p344 = pneg %p222
        %s345 = sand.u32 %s212, 1
        %s346 = scalar_lea.sflag [#allocation8], %s345
        %s347 = sand.u32 %s212, 1
        %s348 = smul.addr %s347, 12
        %s349 = scalar_lea.vmem [#allocation11], %s348
        %p350 = scmp.lt.s32.totalorder %s26, 1
        %s351 = scalar_select %p350, %s26, 1
        %s352 = smul.addr %s351, 4
        %s353 = scalar_lea.vmem %s0, %s352
        %354 = vst [vmem:[#allocation2] sm:$0xff] 0.0
        %355 = vst [vmem:[#allocation2 + $0x8] sm:$0xff] 0.0
        %vm356 = vcmask 556032
        %357 = vst.msk [vmem:[#allocation2 + $0x10] sm:$0xff] %vm356, 0.0
        %v358 = vld [vmem:[%s309] sm:$0xff]
        %v359 = vld [vmem:[%s309 + $0x8] sm:$0xf]
        %v362 = vcombine.high %v358, %v358
        %363 = vrot.lane.b32.xlu0 %v358, 18
        %v364 = vpop.permute.xlu0 %363
        %365 = vrot.lane.b32.xlu0 %v362, 18
        %v366 = vpop.permute.xlu0 %365
        %367 = vrot.lane.b32.xlu0 %v359, 18
        %v368 = vpop.permute.xlu0 %367
        %vm369 = vcmask 146432
        %v370 = vsel %vm369, %v364, %v366
        %v371 = vsel %vm369, %v366, %v368
        %vm375 = vcmask 1043600
        %376 = vst.msk [vmem:[#allocation2] sm:$0xf] %vm375, %v364
        %377 = vst [vmem:[#allocation2 + $0x8] sm:$0xf] %v370
        %vm378 = vcmask 404480
        %379 = vst.msk [vmem:[#allocation2 + $0x10] sm:$0xf] %vm378, %v371
        %v380 = vld [vmem:[%s353] sm:$0xf]
        %v381 = vld [vmem:[#allocation9] sm:$0xff]
        %v382 = vld [vmem:[#allocation9 + $0x8] sm:$0xff]
        %v383 = vld [vmem:[#allocation9 + $0x10] sm:$0xff]
        %v384 = vld [vmem:[#allocation9 + $0x18] sm:$0xff]
        %v385 = vld [vmem:[#allocation9 + $0x20] sm:$0xff]
        %v386 = vld [vmem:[#allocation9 + $0x28] sm:$0xff]
        %v387 = vld [vmem:[#allocation9 + $0x30] sm:$0xff]
        %v388 = vld [vmem:[#allocation9 + $0x38] sm:$0xff]
        %v389 = vld [vmem:[#allocation9 + $0x40] sm:$0xff]
        %v390 = vld [vmem:[#allocation9 + $0x48] sm:$0xff]
        %v391 = vld [vmem:[#allocation9 + $0x50] sm:$0xff]
        %v392 = vld [vmem:[#allocation9 + $0x58] sm:$0xff]
        %v393 = vld [vmem:[#allocation9 + $0x60] sm:$0xff]
        %v394 = vld [vmem:[#allocation9 + $0x68] sm:$0xff]
        %v395 = vld [vmem:[#allocation9 + $0x70] sm:$0xff]
        %v396 = vld [vmem:[#allocation9 + $0x78] sm:$0xff]
        %v397 = vld [vmem:[#allocation9 + $0x80] sm:$0xff]
        %v398 = vld [vmem:[#allocation9 + $0x88] sm:$0xff]
        %v399 = vld [vmem:[#allocation9 + $0x90] sm:$0xff]
        %v400 = vld [vmem:[#allocation9 + $0x98] sm:$0xff]
        %v401 = vld [vmem:[#allocation9 + $0xa0] sm:$0xff]
        %v402 = vld [vmem:[#allocation9 + $0xa8] sm:$0xff]
        %v403 = vld [vmem:[#allocation9 + $0xb0] sm:$0xff]
        %v404 = vld [vmem:[#allocation9 + $0xb8] sm:$0xff]
        %vm405 = vcmask 523264
        %v407 = vsel %vm405, %v380, 0
        %409 = vmatprep.subr.mxu0 %v382
        %410 = vmatpush1.msra.mxu0 %v381
        %411 = vmatprep.subr.mxu0 %v385
        %412 = vmatpush1.msra.mxu0 %v384
        %413 = vmatprep.subr.mxu0 %v388
        %414 = vmatpush1.msra.mxu0 %v387
        %415 = vmatprep.subr.mxu0 %v391
        %416 = vmatpush1.msra.mxu0 %v390
        %417 = vmatprep.subr.mxu0 %v394
        %418 = vmatpush1.msra.mxu0 %v393
        %419 = vmatprep.subr.mxu0 %v397
        %420 = vmatpush1.msra.mxu0 %v396
        %421 = vmatprep.subr.mxu0 %v400
        %422 = vmatpush1.msra.mxu0 %v399
        %423 = vmatprep.subr.mxu0 %v403
        %424 = vmatpush1.msra.mxu0 %v402
        %425 = vmatprep.subr.mxu0 0.0
        %426 = vmatpush1.msra.mxu0 0.0
        %427 = vmatprep.subr.mxu0 0.0
        %428 = vmatpush1.msra.mxu0 0.0
        %429 = vmatprep.subr.mxu0 0.0
        %430 = vmatpush1.msra.mxu0 0.0
        %431 = vmatprep.subr.mxu0 0.0
        %432 = vmatpush1.msra.mxu0 0.0
        %433 = vmatprep.subr.mxu0 0.0
        %434 = vmatpush1.msra.mxu0 0.0
        %435 = vmatprep.subr.mxu0 0.0
        %436 = vmatpush1.msra.mxu0 0.0
        %437 = vmatprep.subr.mxu0 0.0
        %438 = vmatpush1.msra.mxu0 0.0
        %439 = vmatprep.subr.mxu0 0.0
        %440 = vmatpush1.msra.mxu0 0.0
        %441 = vmatprep.subr.mxu0 0.0
        %442 = vmatpush1.msra.mxu0 0.0
        %443 = vmatprep.subr.mxu0 0.0
        %444 = vmatpush1.msra.mxu0 0.0
        %445 = vmatprep.subr.mxu0 0.0
        %446 = vmatpush1.msra.mxu0 0.0
        %447 = vmatprep.subr.mxu0 0.0
        %448 = vmatpush1.msra.mxu0 0.0
        %449 = vmatprep.subr.mxu0 0.0
        %450 = vmatpush1.msra.mxu0 0.0
        %451 = vmatprep.subr.mxu0 0.0
        %452 = vmatpush1.msra.mxu0 0.0
        %453 = vmatprep.subr.mxu0 0.0
        %454 = vmatpush1.msra.mxu0 0.0
        %455 = vmatprep.subr.mxu0 0.0
        %456 = vmatpush1.msra.mxu0 0.0
        %457 = vmatprep.subr.mxu0 0.0
        %458 = vmatpush1.msra.mxu0 0.0
        %459 = vmatprep.subr.mxu0 0.0
        %460 = vmatpush1.msra.mxu0 0.0
        %461 = vmatprep.subr.mxu0 0.0
        %462 = vmatpush1.msra.mxu0 0.0
        %463 = vmatprep.subr.mxu0 0.0
        %464 = vmatpush1.msra.mxu0 0.0
        %465 = vmatprep.subr.mxu0 0.0
        %466 = vmatpush1.msra.mxu0 0.0
        %467 = vmatprep.subr.mxu0 0.0
        %468 = vmatpush1.msra.mxu0 0.0
        %469 = vmatprep.subr.mxu0 0.0
        %470 = vmatpush1.msra.mxu0 0.0
        %471 = vmatprep.subr.mxu0 0.0
        %472 = vmatpush1.msra.mxu0 0.0
        %473 = vmatprep.mubr.f32.mxu0 0.0
        %474 = vmatmul.mubr.f32.gmra.mrb[0].mxu0 %v407
        %v475 = vpop.f32.mrb[0].mxu0
        %v476 = vadd.f32 0.0, %v475
        %v477 = vpop.f32.mrb[0].mxu0
        %v478 = vadd.f32 0.0, %v477
        %479 = vdwg.mxu0
        %480 = vmatprep.subr.mxu0 0.0
        %481 = vmatpush1.msra.mxu0 %v383
        %482 = vmatprep.subr.mxu0 0.0
        %483 = vmatpush1.msra.mxu0 %v386
        %484 = vmatprep.subr.mxu0 0.0
        %485 = vmatpush1.msra.mxu0 %v389
        %486 = vmatprep.subr.mxu0 0.0
        %487 = vmatpush1.msra.mxu0 %v392
        %488 = vmatprep.subr.mxu0 0.0
        %489 = vmatpush1.msra.mxu0 %v395
        %490 = vmatprep.subr.mxu0 0.0
        %491 = vmatpush1.msra.mxu0 %v398
        %492 = vmatprep.subr.mxu0 0.0
        %493 = vmatpush1.msra.mxu0 %v401
        %494 = vmatprep.subr.mxu0 0.0
        %495 = vmatpush1.msra.mxu0 %v404
        %496 = vmatprep.subr.mxu0 0.0
        %497 = vmatpush1.msra.mxu0 0.0
        %498 = vmatprep.subr.mxu0 0.0
        %499 = vmatpush1.msra.mxu0 0.0
        %500 = vmatprep.subr.mxu0 0.0
        %501 = vmatpush1.msra.mxu0 0.0
        %502 = vmatprep.subr.mxu0 0.0
        %503 = vmatpush1.msra.mxu0 0.0
        %504 = vmatprep.subr.mxu0 0.0
        %505 = vmatpush1.msra.mxu0 0.0
        %506 = vmatprep.subr.mxu0 0.0
        %507 = vmatpush1.msra.mxu0 0.0
        %508 = vmatprep.subr.mxu0 0.0
        %509 = vmatpush1.msra.mxu0 0.0
        %510 = vmatprep.subr.mxu0 0.0
        %511 = vmatpush1.msra.mxu0 0.0
        %512 = vmatprep.subr.mxu0 0.0
        %513 = vmatpush1.msra.mxu0 0.0
        %514 = vmatprep.subr.mxu0 0.0
        %515 = vmatpush1.msra.mxu0 0.0
        %516 = vmatprep.subr.mxu0 0.0
        %517 = vmatpush1.msra.mxu0 0.0
        %518 = vmatprep.subr.mxu0 0.0
        %519 = vmatpush1.msra.mxu0 0.0
        %520 = vmatprep.subr.mxu0 0.0
        %521 = vmatpush1.msra.mxu0 0.0
        %522 = vmatprep.subr.mxu0 0.0
        %523 = vmatpush1.msra.mxu0 0.0
        %524 = vmatprep.subr.mxu0 0.0
        %525 = vmatpush1.msra.mxu0 0.0
        %526 = vmatprep.subr.mxu0 0.0
        %527 = vmatpush1.msra.mxu0 0.0
        %528 = vmatprep.subr.mxu0 0.0
        %529 = vmatpush1.msra.mxu0 0.0
        %530 = vmatprep.subr.mxu0 0.0
        %531 = vmatpush1.msra.mxu0 0.0
        %532 = vmatprep.subr.mxu0 0.0
        %533 = vmatpush1.msra.mxu0 0.0
        %534 = vmatprep.subr.mxu0 0.0
        %535 = vmatpush1.msra.mxu0 0.0
        %536 = vmatprep.subr.mxu0 0.0
        %537 = vmatpush1.msra.mxu0 0.0
        %538 = vmatprep.subr.mxu0 0.0
        %539 = vmatpush1.msra.mxu0 0.0
        %540 = vmatprep.subr.mxu0 0.0
        %541 = vmatpush1.msra.mxu0 0.0
        %542 = vmatprep.subr.mxu0 0.0
        %543 = vmatpush1.msra.mxu0 0.0
        %544 = vmatprep.mubr.f32.mxu0 0.0
        %545 = vmatmul.mubr.f32.gmra.mrb[0].mxu0 %v407
        %v546 = vpop.f32.mrb[0].mxu0
        %v547 = vadd.f32 0.0, %v546
        %v548 = vpop.f32.mrb[0].mxu0
        %549 = vdwg.mxu0
        %v553 = vrot.slane %v476, 4
        %v554 = vrot.slane %v478, 4
        %v555 = vrot.slane %v547, 4
        %559 = vst [vmem:[#allocation2] sm:$0xf0] %v553
        %560 = vst [vmem:[#allocation2 + $0x8] sm:$0xf0] %v554
        %vm561 = vcmask 556036
        %562 = vst.msk [vmem:[#allocation2 + $0x10] sm:$0xf0] %vm561, %v555
        %v563 = vld [vmem:[%s4] sm:$0xf]
        %v564 = vld [vmem:[%s5] sm:$0xf]
        %v565 = vld [vmem:[#allocation2] sm:$0xff]
        %v566 = vld [vmem:[#allocation2 + $0x8] sm:$0xff]
        %v567 = vld [vmem:[#allocation2 + $0x10] sm:$0xff]
        %568 = vst [vmem:[#allocation4] sm:$0xff] %v565
        %569 = vst [vmem:[#allocation4 + $0x8] sm:$0xff] %v566
        %vm570 = vcmask 244736
        %571 = vst.msk [vmem:[#allocation4 + $0x10] sm:$0xff] %vm570, %v567
        %v572 = vld [vmem:[#allocation2] sm:$0xff]
        %v573 = vld [vmem:[#allocation2 + $0x8] sm:$0xff]
        %v574 = vld [vmem:[#allocation2 + $0x10] sm:$0xff]
        %578 = vrot.lane.b32.xlu0 %v572, 127
        %v579 = vpop.permute.xlu0 %578
        %580 = vrot.lane.b32.xlu0 %v573, 127
        %v581 = vpop.permute.xlu0 %580
        %582 = vrot.lane.b32.xlu0 %v574, 127
        %v583 = vpop.permute.xlu0 %582
        %vm584 = vcmask 1039360
        %v585 = vsel %vm584, %v579, %v581
        %v586 = vsel %vm584, %v581, %v583
        %590 = vst [vmem:[#allocation4 + $0x18] sm:$0xff] %v585
        %591 = vst [vmem:[#allocation4 + $0x20] sm:$0xff] %v586
        %592 = vst.msk [vmem:[#allocation4 + $0x28] sm:$0xff] %vm570, %v583
        %v593 = vld [vmem:[#allocation2] sm:$0xff]
        %v594 = vld [vmem:[#allocation2 + $0x8] sm:$0xff]
        %v595 = vld [vmem:[#allocation2 + $0x10] sm:$0xff]
        %599 = vrot.lane.b32.xlu0 %v593, 126
        %v600 = vpop.permute.xlu0 %599
        %601 = vrot.lane.b32.xlu0 %v594, 126
        %v602 = vpop.permute.xlu0 %601
        %603 = vrot.lane.b32.xlu0 %v595, 126
        %v604 = vpop.permute.xlu0 %603
        %vm605 = vcmask 1031168
        %v606 = vsel %vm605, %v600, %v602
        %v607 = vsel %vm605, %v602, %v604
        %611 = vst [vmem:[#allocation4 + $0x30] sm:$0xff] %v606
        %612 = vst [vmem:[#allocation4 + $0x38] sm:$0xff] %v607
        %613 = vst.msk [vmem:[#allocation4 + $0x40] sm:$0xff] %vm570, %v604
        %v614 = vld [vmem:[#allocation2] sm:$0xff]
        %v615 = vld [vmem:[#allocation2 + $0x8] sm:$0xff]
        %v616 = vld [vmem:[#allocation2 + $0x10] sm:$0xff]
        %620 = vrot.lane.b32.xlu0 %v614, 110
        %v621 = vpop.permute.xlu0 %620
        %622 = vrot.lane.b32.xlu0 %v615, 110
        %v623 = vpop.permute.xlu0 %622
        %624 = vrot.lane.b32.xlu0 %v616, 110
        %v625 = vpop.permute.xlu0 %624
        %vm626 = vcmask 900096
        %v627 = vsel %vm626, %v621, %v623
        %v628 = vsel %vm626, %v623, %v625
        %632 = vst [vmem:[#allocation4 + $0x48] sm:$0xff] %v627
        %633 = vst [vmem:[#allocation4 + $0x50] sm:$0xff] %v628
        %634 = vst.msk [vmem:[#allocation4 + $0x58] sm:$0xff] %vm570, %v625
        %v635 = vld [vmem:[#allocation2] sm:$0xff]
        %v636 = vld [vmem:[#allocation2 + $0x8] sm:$0xff]
        %v637 = vld [vmem:[#allocation2 + $0x10] sm:$0xff]
        %641 = vrot.lane.b32.xlu0 %v635, 109
        %v642 = vpop.permute.xlu0 %641
        %643 = vrot.lane.b32.xlu0 %v636, 109
        %v644 = vpop.permute.xlu0 %643
        %645 = vrot.lane.b32.xlu0 %v637, 109
        %v646 = vpop.permute.xlu0 %645
        %vm647 = vcmask 891904
        %v648 = vsel %vm647, %v642, %v644
        %v649 = vsel %vm647, %v644, %v646
        %653 = vst [vmem:[#allocation4 + $0x60] sm:$0xff] %v648
        %654 = vst [vmem:[#allocation4 + $0x68] sm:$0xff] %v649
        %655 = vst.msk [vmem:[#allocation4 + $0x70] sm:$0xff] %vm570, %v646
        %v656 = vld [vmem:[#allocation2] sm:$0xff]
        %v657 = vld [vmem:[#allocation2 + $0x8] sm:$0xff]
        %v658 = vld [vmem:[#allocation2 + $0x10] sm:$0xff]
        %662 = vrot.lane.b32.xlu0 %v656, 108
        %v663 = vpop.permute.xlu0 %662
        %664 = vrot.lane.b32.xlu0 %v657, 108
        %v665 = vpop.permute.xlu0 %664
        %666 = vrot.lane.b32.xlu0 %v658, 108
        %v667 = vpop.permute.xlu0 %666
        %vm668 = vcmask 883712
        %v669 = vsel %vm668, %v663, %v665
        %v670 = vsel %vm668, %v665, %v667
        %674 = vst [vmem:[#allocation4 + $0x78] sm:$0xff] %v669
        %675 = vst [vmem:[#allocation4 + $0x80] sm:$0xff] %v670
        %676 = vst.msk [vmem:[#allocation4 + $0x88] sm:$0xff] %vm570, %v667
        %v677 = vld [vmem:[#allocation2] sm:$0xff]
        %v678 = vld [vmem:[#allocation2 + $0x8] sm:$0xff]
        %v679 = vld [vmem:[#allocation2 + $0x10] sm:$0xff]
        %683 = vrot.lane.b32.xlu0 %v677, 92
        %v684 = vpop.permute.xlu0 %683
        %685 = vrot.lane.b32.xlu0 %v678, 92
        %v686 = vpop.permute.xlu0 %685
        %687 = vrot.lane.b32.xlu0 %v679, 92
        %v688 = vpop.permute.xlu0 %687
        %vm689 = vcmask 752640
        %v690 = vsel %vm689, %v684, %v686
        %v691 = vsel %vm689, %v686, %v688
        %695 = vst [vmem:[#allocation4 + $0x90] sm:$0xff] %v690
        %696 = vst [vmem:[#allocation4 + $0x98] sm:$0xff] %v691
        %697 = vst.msk [vmem:[#allocation4 + $0xa0] sm:$0xff] %vm570, %v688
        %v698 = vld [vmem:[#allocation2] sm:$0xff]
        %v699 = vld [vmem:[#allocation2 + $0x8] sm:$0xff]
        %v700 = vld [vmem:[#allocation2 + $0x10] sm:$0xff]
        %704 = vrot.lane.b32.xlu0 %v698, 91
        %v705 = vpop.permute.xlu0 %704
        %706 = vrot.lane.b32.xlu0 %v699, 91
        %v707 = vpop.permute.xlu0 %706
        %708 = vrot.lane.b32.xlu0 %v700, 91
        %v709 = vpop.permute.xlu0 %708
        %vm710 = vcmask 744448
        %v711 = vsel %vm710, %v705, %v707
        %v712 = vsel %vm710, %v707, %v709
        %716 = vst [vmem:[#allocation4 + $0xa8] sm:$0xff] %v711
        %717 = vst [vmem:[#allocation4 + $0xb0] sm:$0xff] %v712
        %718 = vst.msk [vmem:[#allocation4 + $0xb8] sm:$0xff] %vm570, %v709
        %v719 = vld [vmem:[#allocation2] sm:$0xff]
        %v720 = vld [vmem:[#allocation2 + $0x8] sm:$0xff]
        %v721 = vld [vmem:[#allocation2 + $0x10] sm:$0xff]
        %725 = vrot.lane.b32.xlu0 %v719, 90
        %v726 = vpop.permute.xlu0 %725
        %727 = vrot.lane.b32.xlu0 %v720, 90
        %v728 = vpop.permute.xlu0 %727
        %729 = vrot.lane.b32.xlu0 %v721, 90
        %v730 = vpop.permute.xlu0 %729
        %vm731 = vcmask 736256
        %v732 = vsel %vm731, %v726, %v728
        %v733 = vsel %vm731, %v728, %v730
        %737 = vst [vmem:[#allocation4 + $0xc0] sm:$0xff] %v732
        %738 = vst [vmem:[#allocation4 + $0xc8] sm:$0xff] %v733
        %739 = vst.msk [vmem:[#allocation4 + $0xd0] sm:$0xff] %vm570, %v730
        %v740 = vld [vmem:[#allocation4] sm:$0xff]
        %v741 = vld [vmem:[#allocation4 + $0x8] sm:$0xff]
        %v742 = vld [vmem:[#allocation4 + $0x10] sm:$0xff]
        %v743 = vld [vmem:[#allocation4 + $0x18] sm:$0xff]
        %v744 = vld [vmem:[#allocation4 + $0x20] sm:$0xff]
        %v745 = vld [vmem:[#allocation4 + $0x28] sm:$0xff]
        %v746 = vld [vmem:[#allocation4 + $0x30] sm:$0xff]
        %v747 = vld [vmem:[#allocation4 + $0x38] sm:$0xff]
        %v748 = vld [vmem:[#allocation4 + $0x40] sm:$0xff]
        %v749 = vld [vmem:[#allocation4 + $0x48] sm:$0xff]
        %v750 = vld [vmem:[#allocation4 + $0x50] sm:$0xff]
        %v751 = vld [vmem:[#allocation4 + $0x58] sm:$0xff]
        %v752 = vld [vmem:[#allocation4 + $0x60] sm:$0xff]
        %v753 = vld [vmem:[#allocation4 + $0x68] sm:$0xff]
        %v754 = vld [vmem:[#allocation4 + $0x70] sm:$0xff]
        %v755 = vld [vmem:[#allocation4 + $0x78] sm:$0xff]
        %v756 = vld [vmem:[#allocation4 + $0x80] sm:$0xff]
        %v757 = vld [vmem:[#allocation4 + $0x88] sm:$0xff]
        %v758 = vld [vmem:[#allocation4 + $0x90] sm:$0xff]
        %v759 = vld [vmem:[#allocation4 + $0x98] sm:$0xff]
        %v760 = vld [vmem:[#allocation4 + $0xa0] sm:$0xff]
        %v761 = vld [vmem:[#allocation4 + $0xa8] sm:$0xff]
        %v762 = vld [vmem:[#allocation4 + $0xb0] sm:$0xff]
        %v763 = vld [vmem:[#allocation4 + $0xb8] sm:$0xff]
        %v764 = vld [vmem:[#allocation4 + $0xc0] sm:$0xff]
        %v765 = vld [vmem:[#allocation4 + $0xc8] sm:$0xff]
        %v766 = vld [vmem:[#allocation4 + $0xd0] sm:$0xff]
        %768 = vset.pattern.permute.xlu0 0
        %769 = vperm.xlu0 %768, %v564
        %v770 = vpop.permute.xlu0 %769
        %vm772 = vcmask 588800
        %v774 = vsel %vm772, %v563, 0
        %776 = vmatprep.subr.mxu0 %v741
        %777 = vmatpush1.msra.mxu0 %v740
        %778 = vmatprep.subr.mxu0 %v744
        %779 = vmatpush1.msra.mxu0 %v743
        %780 = vmatprep.subr.mxu0 %v747
        %781 = vmatpush1.msra.mxu0 %v746
        %782 = vmatprep.subr.mxu0 %v750
        %783 = vmatpush1.msra.mxu0 %v749
        %784 = vmatprep.subr.mxu0 %v753
        %785 = vmatpush1.msra.mxu0 %v752
        %786 = vmatprep.subr.mxu0 %v756
        %787 = vmatpush1.msra.mxu0 %v755
        %788 = vmatprep.subr.mxu0 %v759
        %789 = vmatpush1.msra.mxu0 %v758
        %790 = vmatprep.subr.mxu0 %v762
        %791 = vmatpush1.msra.mxu0 %v761
        %792 = vmatprep.subr.mxu0 %v765
        %793 = vmatpush1.msra.mxu0 %v764
        %794 = vmatprep.subr.mxu0 0.0
        %795 = vmatpush1.msra.mxu0 0.0
        %796 = vmatprep.subr.mxu0 0.0
        %797 = vmatpush1.msra.mxu0 0.0
        %798 = vmatprep.subr.mxu0 0.0
        %799 = vmatpush1.msra.mxu0 0.0
        %800 = vmatprep.subr.mxu0 0.0
        %801 = vmatpush1.msra.mxu0 0.0
        %802 = vmatprep.subr.mxu0 0.0
        %803 = vmatpush1.msra.mxu0 0.0
        %804 = vmatprep.subr.mxu0 0.0
        %805 = vmatpush1.msra.mxu0 0.0
        %806 = vmatprep.subr.mxu0 0.0
        %807 = vmatpush1.msra.mxu0 0.0
        %808 = vmatprep.subr.mxu0 0.0
        %809 = vmatpush1.msra.mxu0 0.0
        %810 = vmatprep.subr.mxu0 0.0
        %811 = vmatpush1.msra.mxu0 0.0
        %812 = vmatprep.subr.mxu0 0.0
        %813 = vmatpush1.msra.mxu0 0.0
        %814 = vmatprep.subr.mxu0 0.0
        %815 = vmatpush1.msra.mxu0 0.0
        %816 = vmatprep.subr.mxu0 0.0
        %817 = vmatpush1.msra.mxu0 0.0
        %818 = vmatprep.subr.mxu0 0.0
        %819 = vmatpush1.msra.mxu0 0.0
        %820 = vmatprep.subr.mxu0 0.0
        %821 = vmatpush1.msra.mxu0 0.0
        %822 = vmatprep.subr.mxu0 0.0
        %823 = vmatpush1.msra.mxu0 0.0
        %824 = vmatprep.subr.mxu0 0.0
        %825 = vmatpush1.msra.mxu0 0.0
        %826 = vmatprep.subr.mxu0 0.0
        %827 = vmatpush1.msra.mxu0 0.0
        %828 = vmatprep.subr.mxu0 0.0
        %829 = vmatpush1.msra.mxu0 0.0
        %830 = vmatprep.subr.mxu0 0.0
        %831 = vmatpush1.msra.mxu0 0.0
        %832 = vmatprep.subr.mxu0 0.0
        %833 = vmatpush1.msra.mxu0 0.0
        %834 = vmatprep.subr.mxu0 0.0
        %835 = vmatpush1.msra.mxu0 0.0
        %836 = vmatprep.subr.mxu0 0.0
        %837 = vmatpush1.msra.mxu0 0.0
        %838 = vmatprep.subr.mxu0 0.0
        %839 = vmatpush1.msra.mxu0 0.0
        %840 = vmatprep.mubr.f32.mxu0 0.0
        %841 = vmatmul.mubr.f32.gmra.mrb[0].mxu0 %v774
        %v842 = vpop.f32.mrb[0].mxu0
        %v843 = vadd.f32 %v770, %v842
        %v844 = vpop.f32.mrb[0].mxu0
        %v845 = vadd.f32 %v770, %v844
        %846 = vdwg.mxu0
        %847 = vmatprep.subr.mxu0 0.0
        %848 = vmatpush1.msra.mxu0 %v742
        %849 = vmatprep.subr.mxu0 0.0
        %850 = vmatpush1.msra.mxu0 %v745
        %851 = vmatprep.subr.mxu0 0.0
        %852 = vmatpush1.msra.mxu0 %v748
        %853 = vmatprep.subr.mxu0 0.0
        %854 = vmatpush1.msra.mxu0 %v751
        %855 = vmatprep.subr.mxu0 0.0
        %856 = vmatpush1.msra.mxu0 %v754
        %857 = vmatprep.subr.mxu0 0.0
        %858 = vmatpush1.msra.mxu0 %v757
        %859 = vmatprep.subr.mxu0 0.0
        %860 = vmatpush1.msra.mxu0 %v760
        %861 = vmatprep.subr.mxu0 0.0
        %862 = vmatpush1.msra.mxu0 %v763
        %863 = vmatprep.subr.mxu0 0.0
        %864 = vmatpush1.msra.mxu0 %v766
        %865 = vmatprep.subr.mxu0 0.0
        %866 = vmatpush1.msra.mxu0 0.0
        %867 = vmatprep.subr.mxu0 0.0
        %868 = vmatpush1.msra.mxu0 0.0
        %869 = vmatprep.subr.mxu0 0.0
        %870 = vmatpush1.msra.mxu0 0.0
        %871 = vmatprep.subr.mxu0 0.0
        %872 = vmatpush1.msra.mxu0 0.0
        %873 = vmatprep.subr.mxu0 0.0
        %874 = vmatpush1.msra.mxu0 0.0
        %875 = vmatprep.subr.mxu0 0.0
        %876 = vmatpush1.msra.mxu0 0.0
        %877 = vmatprep.subr.mxu0 0.0
        %878 = vmatpush1.msra.mxu0 0.0
        %879 = vmatprep.subr.mxu0 0.0
        %880 = vmatpush1.msra.mxu0 0.0
        %881 = vmatprep.subr.mxu0 0.0
        %882 = vmatpush1.msra.mxu0 0.0
        %883 = vmatprep.subr.mxu0 0.0
        %884 = vmatpush1.msra.mxu0 0.0
        %885 = vmatprep.subr.mxu0 0.0
        %886 = vmatpush1.msra.mxu0 0.0
        %887 = vmatprep.subr.mxu0 0.0
        %888 = vmatpush1.msra.mxu0 0.0
        %889 = vmatprep.subr.mxu0 0.0
        %890 = vmatpush1.msra.mxu0 0.0
        %891 = vmatprep.subr.mxu0 0.0
        %892 = vmatpush1.msra.mxu0 0.0
        %893 = vmatprep.subr.mxu0 0.0
        %894 = vmatpush1.msra.mxu0 0.0
        %895 = vmatprep.subr.mxu0 0.0
        %896 = vmatpush1.msra.mxu0 0.0
        %897 = vmatprep.subr.mxu0 0.0
        %898 = vmatpush1.msra.mxu0 0.0
        %899 = vmatprep.subr.mxu0 0.0
        %900 = vmatpush1.msra.mxu0 0.0
        %901 = vmatprep.subr.mxu0 0.0
        %902 = vmatpush1.msra.mxu0 0.0
        %903 = vmatprep.subr.mxu0 0.0
        %904 = vmatpush1.msra.mxu0 0.0
        %905 = vmatprep.subr.mxu0 0.0
        %906 = vmatpush1.msra.mxu0 0.0
        %907 = vmatprep.subr.mxu0 0.0
        %908 = vmatpush1.msra.mxu0 0.0
        %909 = vmatprep.subr.mxu0 0.0
        %910 = vmatpush1.msra.mxu0 0.0
        %911 = vmatprep.mubr.f32.mxu0 0.0
        %912 = vmatmul.mubr.f32.gmra.mrb[0].mxu0 %v774
        %v913 = vpop.f32.mrb[0].mxu0
        %v914 = vadd.f32 %v770, %v913
        %v915 = vpop.f32.mrb[0].mxu0
        %916 = vdwg.mxu0
        %v917 = vmax.f32 %v843, 0.0
        %v918 = vmax.f32 %v845, 0.0
        %v919 = vmax.f32 %v914, 0.0
        %v920 = vld [vmem:[%s3] sm:$0x7]
        %v922 = vlaneseq
        %v923 = vshrl.u32 %v922, 7
        %v924 = vsub.s32 0, %v923
        %v925 = vrot.slane %v920, %v924
        %v926 = vlaneseq
        %v927 = vshrl.u32 %v926, 7
        %v928 = vsub.s32 1, %v927
        %v929 = vrot.slane %v920, %v928
        %v930 = vlaneseq
        %v931 = vshrl.u32 %v930, 7
        %v932 = vsub.s32 2, %v931
        %v933 = vrot.slane %v920, %v932
        %v937 = vmul.f32 %v917, %v925
        %v938 = vmul.f32 %v918, %v929
        %v939 = vmul.f32 %v919, %v933
        %940 = vst [vmem:[#allocation3] sm:$0xff] 0.0
        %vm941 = vcmask 551936
        %942 = vst.msk [vmem:[#allocation3 + $0x8] sm:$0xf] %vm941, 0.0
        %v946 = vcombine.low %v937, %v938
        %947 = vrot.lane.b32.xlu0 %v946, 19
        %v948 = vpop.permute.xlu0 %947
        %949 = vrot.lane.b32.xlu0 %v939, 19
        %v950 = vpop.permute.xlu0 %949
        %v951 = vrot.slane %v948, 4
        %vm952 = vcmask 154624
        %v953 = vsel %vm952, %v951, %v948
        %v954 = vsel %vm952, %v951, %v950
        %vm957 = vcmask 1043608
        %vm958 = vcmask 1047556
        %vm959 = vmor %vm958, %vm957
        %960 = vst.msk [vmem:[#allocation3] sm:$0xff] %vm959, %v953
        %vm961 = vcmask 396288
        %962 = vst.msk [vmem:[#allocation3 + $0x8] sm:$0xf] %vm961, %v954
        %v963 = vld [vmem:[%s6] sm:$0xf]
        %v964 = vld [vmem:[%s7] sm:$0xf]
        %v965 = vld [vmem:[#allocation3] sm:$0xff]
        %v966 = vld [vmem:[#allocation3 + $0x8] sm:$0xf]
        %v968 = vcombine.high %v965, %v965
        %970 = vst [vmem:[#allocation5] sm:$0xf] %v965
        %971 = vst [vmem:[#allocation5 + $0x8] sm:$0xf] %v968
        %vm972 = vcmask 240640
        %973 = vst.msk [vmem:[#allocation5 + $0x10] sm:$0xf] %vm972, %v966
        %v974 = vld [vmem:[#allocation3] sm:$0xff]
        %v975 = vld [vmem:[#allocation3 + $0x8] sm:$0xf]
        %v978 = vcombine.low %v974, %v974
        %v979 = vcombine.low %v975, %v975
        %980 = vrot.lane.b32.xlu0 %v978, 127
        %v981 = vpop.permute.xlu0 %980
        %982 = vrot.lane.b32.xlu0 %v974, 127
        %v983 = vpop.permute.xlu0 %982
        %984 = vrot.lane.b32.xlu0 %v979, 127
        %v985 = vpop.permute.xlu0 %984
        %v986 = vsel %vm584, %v981, %v983
        %v987 = vsel %vm584, %v983, %v985
        %991 = vst [vmem:[#allocation5] sm:$0xf0] %v986
        %992 = vst [vmem:[#allocation5 + $0x8] sm:$0xf0] %v987
        %vm993 = vcmask 244740
        %994 = vst.msk [vmem:[#allocation5 + $0x10] sm:$0xf0] %vm993, %v985
        %v995 = vld [vmem:[#allocation3] sm:$0xff]
        %v996 = vld [vmem:[#allocation3 + $0x8] sm:$0xf]
        %v999 = vcombine.high %v995, %v995
        %1000 = vrot.lane.b32.xlu0 %v995, 126
        %v1001 = vpop.permute.xlu0 %1000
        %1002 = vrot.lane.b32.xlu0 %v999, 126
        %v1003 = vpop.permute.xlu0 %1002
        %1004 = vrot.lane.b32.xlu0 %v996, 126
        %v1005 = vpop.permute.xlu0 %1004
        %v1006 = vsel %vm605, %v1001, %v1003
        %v1007 = vsel %vm605, %v1003, %v1005
        %1011 = vst [vmem:[#allocation5 + $0x18] sm:$0xf] %v1006
        %1012 = vst [vmem:[#allocation5 + $0x20] sm:$0xf] %v1007
        %1013 = vst.msk [vmem:[#allocation5 + $0x28] sm:$0xf] %vm972, %v1005
        %v1014 = vld [vmem:[#allocation3] sm:$0xff]
        %v1015 = vld [vmem:[#allocation3 + $0x8] sm:$0xf]
        %v1018 = vcombine.low %v1014, %v1014
        %v1019 = vcombine.low %v1015, %v1015
        %1020 = vrot.lane.b32.xlu0 %v1018, 110
        %v1021 = vpop.permute.xlu0 %1020
        %1022 = vrot.lane.b32.xlu0 %v1014, 110
        %v1023 = vpop.permute.xlu0 %1022
        %1024 = vrot.lane.b32.xlu0 %v1019, 110
        %v1025 = vpop.permute.xlu0 %1024
        %v1026 = vsel %vm626, %v1021, %v1023
        %v1027 = vsel %vm626, %v1023, %v1025
        %1031 = vst [vmem:[#allocation5 + $0x18] sm:$0xf0] %v1026
        %1032 = vst [vmem:[#allocation5 + $0x20] sm:$0xf0] %v1027
        %1033 = vst.msk [vmem:[#allocation5 + $0x28] sm:$0xf0] %vm993, %v1025
        %v1034 = vld [vmem:[#allocation3] sm:$0xff]
        %v1035 = vld [vmem:[#allocation3 + $0x8] sm:$0xf]
        %v1038 = vcombine.high %v1034, %v1034
        %1039 = vrot.lane.b32.xlu0 %v1034, 109
        %v1040 = vpop.permute.xlu0 %1039
        %1041 = vrot.lane.b32.xlu0 %v1038, 109
        %v1042 = vpop.permute.xlu0 %1041
        %1043 = vrot.lane.b32.xlu0 %v1035, 109
        %v1044 = vpop.permute.xlu0 %1043
        %v1045 = vsel %vm647, %v1040, %v1042
        %v1046 = vsel %vm647, %v1042, %v1044
        %1050 = vst [vmem:[#allocation5 + $0x30] sm:$0xf] %v1045
        %1051 = vst [vmem:[#allocation5 + $0x38] sm:$0xf] %v1046
        %1052 = vst.msk [vmem:[#allocation5 + $0x40] sm:$0xf] %vm972, %v1044
        %v1053 = vld [vmem:[#allocation3] sm:$0xff]
        %v1054 = vld [vmem:[#allocation3 + $0x8] sm:$0xf]
        %v1057 = vcombine.low %v1053, %v1053
        %v1058 = vcombine.low %v1054, %v1054
        %1059 = vrot.lane.b32.xlu0 %v1057, 108
        %v1060 = vpop.permute.xlu0 %1059
        %1061 = vrot.lane.b32.xlu0 %v1053, 108
        %v1062 = vpop.permute.xlu0 %1061
        %1063 = vrot.lane.b32.xlu0 %v1058, 108
        %v1064 = vpop.permute.xlu0 %1063
        %v1065 = vsel %vm668, %v1060, %v1062
        %v1066 = vsel %vm668, %v1062, %v1064
        %1070 = vst [vmem:[#allocation5 + $0x30] sm:$0xf0] %v1065
        %1071 = vst [vmem:[#allocation5 + $0x38] sm:$0xf0] %v1066
        %1072 = vst.msk [vmem:[#allocation5 + $0x40] sm:$0xf0] %vm993, %v1064
        %v1073 = vld [vmem:[#allocation3] sm:$0xff]
        %v1074 = vld [vmem:[#allocation3 + $0x8] sm:$0xf]
        %v1077 = vcombine.high %v1073, %v1073
        %1078 = vrot.lane.b32.xlu0 %v1073, 92
        %v1079 = vpop.permute.xlu0 %1078
        %1080 = vrot.lane.b32.xlu0 %v1077, 92
        %v1081 = vpop.permute.xlu0 %1080
        %1082 = vrot.lane.b32.xlu0 %v1074, 92
        %v1083 = vpop.permute.xlu0 %1082
        %v1084 = vsel %vm689, %v1079, %v1081
        %v1085 = vsel %vm689, %v1081, %v1083
        %1089 = vst [vmem:[#allocation5 + $0x48] sm:$0xf] %v1084
        %1090 = vst [vmem:[#allocation5 + $0x50] sm:$0xf] %v1085
        %1091 = vst.msk [vmem:[#allocation5 + $0x58] sm:$0xf] %vm972, %v1083
        %v1092 = vld [vmem:[#allocation3] sm:$0xff]
        %v1093 = vld [vmem:[#allocation3 + $0x8] sm:$0xf]
        %v1096 = vcombine.low %v1092, %v1092
        %v1097 = vcombine.low %v1093, %v1093
        %1098 = vrot.lane.b32.xlu0 %v1096, 91
        %v1099 = vpop.permute.xlu0 %1098
        %1100 = vrot.lane.b32.xlu0 %v1092, 91
        %v1101 = vpop.permute.xlu0 %1100
        %1102 = vrot.lane.b32.xlu0 %v1097, 91
        %v1103 = vpop.permute.xlu0 %1102
        %v1104 = vsel %vm710, %v1099, %v1101
        %v1105 = vsel %vm710, %v1101, %v1103
        %1109 = vst [vmem:[#allocation5 + $0x48] sm:$0xf0] %v1104
        %1110 = vst [vmem:[#allocation5 + $0x50] sm:$0xf0] %v1105
        %1111 = vst.msk [vmem:[#allocation5 + $0x58] sm:$0xf0] %vm993, %v1103
        %v1112 = vld [vmem:[#allocation3] sm:$0xff]
        %v1113 = vld [vmem:[#allocation3 + $0x8] sm:$0xf]
        %v1116 = vcombine.high %v1112, %v1112
        %1117 = vrot.lane.b32.xlu0 %v1112, 90
        %v1118 = vpop.permute.xlu0 %1117
        %1119 = vrot.lane.b32.xlu0 %v1116, 90
        %v1120 = vpop.permute.xlu0 %1119
        %1121 = vrot.lane.b32.xlu0 %v1113, 90
        %v1122 = vpop.permute.xlu0 %1121
        %v1123 = vsel %vm731, %v1118, %v1120
        %v1124 = vsel %vm731, %v1120, %v1122
        %1128 = vst [vmem:[#allocation5 + $0x60] sm:$0xf] %v1123
        %1129 = vst [vmem:[#allocation5 + $0x68] sm:$0xf] %v1124
        %1130 = vst.msk [vmem:[#allocation5 + $0x70] sm:$0xf] %vm972, %v1122
        %v1131 = vld [vmem:[#allocation5] sm:$0xff]
        %v1132 = vld [vmem:[#allocation5 + $0x8] sm:$0xff]
        %v1133 = vld [vmem:[#allocation5 + $0x10] sm:$0xff]
        %v1134 = vld [vmem:[#allocation5 + $0x18] sm:$0xff]
        %v1135 = vld [vmem:[#allocation5 + $0x20] sm:$0xff]
        %v1136 = vld [vmem:[#allocation5 + $0x28] sm:$0xff]
        %v1137 = vld [vmem:[#allocation5 + $0x30] sm:$0xff]
        %v1138 = vld [vmem:[#allocation5 + $0x38] sm:$0xff]
        %v1139 = vld [vmem:[#allocation5 + $0x40] sm:$0xff]
        %v1140 = vld [vmem:[#allocation5 + $0x48] sm:$0xff]
        %v1141 = vld [vmem:[#allocation5 + $0x50] sm:$0xff]
        %v1142 = vld [vmem:[#allocation5 + $0x58] sm:$0xff]
        %v1143 = vld [vmem:[#allocation5 + $0x60] sm:$0xf]
        %v1144 = vld [vmem:[#allocation5 + $0x68] sm:$0xf]
        %v1145 = vld [vmem:[#allocation5 + $0x70] sm:$0xf]
        %1147 = vset.pattern.permute.xlu0 0
        %1148 = vperm.xlu0 %1147, %v964
        %v1149 = vpop.permute.xlu0 %1148
        %vm1151 = vcmask 293888
        %v1153 = vsel %vm1151, %v963, 0
        %vm1155 = vcmask 1043456
        %v1157 = vsel %vm1155, %v1143, 0
        %v1160 = vsel %vm1155, %v1144, 0
        %v1163 = vsel %vm1155, %v1145, 0
        %1165 = vmatprep.subr.mxu0 %v1132
        %1166 = vmatpush1.msra.mxu0 %v1131
        %1167 = vmatprep.subr.mxu0 %v1135
        %1168 = vmatpush1.msra.mxu0 %v1134
        %1169 = vmatprep.subr.mxu0 %v1138
        %1170 = vmatpush1.msra.mxu0 %v1137
        %1171 = vmatprep.subr.mxu0 %v1141
        %1172 = vmatpush1.msra.mxu0 %v1140
        %1173 = vmatprep.subr.mxu0 %v1160
        %1174 = vmatpush1.msra.mxu0 %v1157
        %1175 = vmatprep.subr.mxu0 0.0
        %1176 = vmatpush1.msra.mxu0 0.0
        %1177 = vmatprep.subr.mxu0 0.0
        %1178 = vmatpush1.msra.mxu0 0.0
        %1179 = vmatprep.subr.mxu0 0.0
        %1180 = vmatpush1.msra.mxu0 0.0
        %1181 = vmatprep.subr.mxu0 0.0
        %1182 = vmatpush1.msra.mxu0 0.0
        %1183 = vmatprep.subr.mxu0 0.0
        %1184 = vmatpush1.msra.mxu0 0.0
        %1185 = vmatprep.subr.mxu0 0.0
        %1186 = vmatpush1.msra.mxu0 0.0
        %1187 = vmatprep.subr.mxu0 0.0
        %1188 = vmatpush1.msra.mxu0 0.0
        %1189 = vmatprep.subr.mxu0 0.0
        %1190 = vmatpush1.msra.mxu0 0.0
        %1191 = vmatprep.subr.mxu0 0.0
        %1192 = vmatpush1.msra.mxu0 0.0
        %1193 = vmatprep.subr.mxu0 0.0
        %1194 = vmatpush1.msra.mxu0 0.0
        %1195 = vmatprep.subr.mxu0 0.0
        %1196 = vmatpush1.msra.mxu0 0.0
        %1197 = vmatprep.subr.mxu0 0.0
        %1198 = vmatpush1.msra.mxu0 0.0
        %1199 = vmatprep.subr.mxu0 0.0
        %1200 = vmatpush1.msra.mxu0 0.0
        %1201 = vmatprep.subr.mxu0 0.0
        %1202 = vmatpush1.msra.mxu0 0.0
        %1203 = vmatprep.subr.mxu0 0.0
        %1204 = vmatpush1.msra.mxu0 0.0
        %1205 = vmatprep.subr.mxu0 0.0
        %1206 = vmatpush1.msra.mxu0 0.0
        %1207 = vmatprep.subr.mxu0 0.0
        %1208 = vmatpush1.msra.mxu0 0.0
        %1209 = vmatprep.subr.mxu0 0.0
        %1210 = vmatpush1.msra.mxu0 0.0
        %1211 = vmatprep.subr.mxu0 0.0
        %1212 = vmatpush1.msra.mxu0 0.0
        %1213 = vmatprep.subr.mxu0 0.0
        %1214 = vmatpush1.msra.mxu0 0.0
        %1215 = vmatprep.subr.mxu0 0.0
        %1216 = vmatpush1.msra.mxu0 0.0
        %1217 = vmatprep.subr.mxu0 0.0
        %1218 = vmatpush1.msra.mxu0 0.0
        %1219 = vmatprep.subr.mxu0 0.0
        %1220 = vmatpush1.msra.mxu0 0.0
        %1221 = vmatprep.subr.mxu0 0.0
        %1222 = vmatpush1.msra.mxu0 0.0
        %1223 = vmatprep.subr.mxu0 0.0
        %1224 = vmatpush1.msra.mxu0 0.0
        %1225 = vmatprep.subr.mxu0 0.0
        %1226 = vmatpush1.msra.mxu0 0.0
        %1227 = vmatprep.subr.mxu0 0.0
        %1228 = vmatpush1.msra.mxu0 0.0
        %1229 = vmatprep.mubr.f32.mxu0 0.0
        %1230 = vmatmul.mubr.f32.gmra.mrb[0].mxu0 %v1153
        %v1231 = vpop.f32.mrb[0].mxu0
        %v1232 = vadd.f32 %v1149, %v1231
        %v1233 = vpop.f32.mrb[0].mxu0
        %v1234 = vadd.f32 %v1149, %v1233
        %1235 = vdwg.mxu0
        %1236 = vmatprep.subr.mxu0 0.0
        %1237 = vmatpush1.msra.mxu0 %v1133
        %1238 = vmatprep.subr.mxu0 0.0
        %1239 = vmatpush1.msra.mxu0 %v1136
        %1240 = vmatprep.subr.mxu0 0.0
        %1241 = vmatpush1.msra.mxu0 %v1139
        %1242 = vmatprep.subr.mxu0 0.0
        %1243 = vmatpush1.msra.mxu0 %v1142
        %1244 = vmatprep.subr.mxu0 0.0
        %1245 = vmatpush1.msra.mxu0 %v1163
        %1246 = vmatprep.subr.mxu0 0.0
        %1247 = vmatpush1.msra.mxu0 0.0
        %1248 = vmatprep.subr.mxu0 0.0
        %1249 = vmatpush1.msra.mxu0 0.0
        %1250 = vmatprep.subr.mxu0 0.0
        %1251 = vmatpush1.msra.mxu0 0.0
        %1252 = vmatprep.subr.mxu0 0.0
        %1253 = vmatpush1.msra.mxu0 0.0
        %1254 = vmatprep.subr.mxu0 0.0
        %1255 = vmatpush1.msra.mxu0 0.0
        %1256 = vmatprep.subr.mxu0 0.0
        %1257 = vmatpush1.msra.mxu0 0.0
        %1258 = vmatprep.subr.mxu0 0.0
        %1259 = vmatpush1.msra.mxu0 0.0
        %1260 = vmatprep.subr.mxu0 0.0
        %1261 = vmatpush1.msra.mxu0 0.0
        %1262 = vmatprep.subr.mxu0 0.0
        %1263 = vmatpush1.msra.mxu0 0.0
        %1264 = vmatprep.subr.mxu0 0.0
        %1265 = vmatpush1.msra.mxu0 0.0
        %1266 = vmatprep.subr.mxu0 0.0
        %1267 = vmatpush1.msra.mxu0 0.0
        %1268 = vmatprep.subr.mxu0 0.0
        %1269 = vmatpush1.msra.mxu0 0.0
        %1270 = vmatprep.subr.mxu0 0.0
        %1271 = vmatpush1.msra.mxu0 0.0
        %1272 = vmatprep.subr.mxu0 0.0
        %1273 = vmatpush1.msra.mxu0 0.0
        %1274 = vmatprep.subr.mxu0 0.0
        %1275 = vmatpush1.msra.mxu0 0.0
        %1276 = vmatprep.subr.mxu0 0.0
        %1277 = vmatpush1.msra.mxu0 0.0
        %1278 = vmatprep.subr.mxu0 0.0
        %1279 = vmatpush1.msra.mxu0 0.0
        %1280 = vmatprep.subr.mxu0 0.0
        %1281 = vmatpush1.msra.mxu0 0.0
        %1282 = vmatprep.subr.mxu0 0.0
        %1283 = vmatpush1.msra.mxu0 0.0
        %1284 = vmatprep.subr.mxu0 0.0
        %1285 = vmatpush1.msra.mxu0 0.0
        %1286 = vmatprep.subr.mxu0 0.0
        %1287 = vmatpush1.msra.mxu0 0.0
        %1288 = vmatprep.subr.mxu0 0.0
        %1289 = vmatpush1.msra.mxu0 0.0
        %1290 = vmatprep.subr.mxu0 0.0
        %1291 = vmatpush1.msra.mxu0 0.0
        %1292 = vmatprep.subr.mxu0 0.0
        %1293 = vmatpush1.msra.mxu0 0.0
        %1294 = vmatprep.subr.mxu0 0.0
        %1295 = vmatpush1.msra.mxu0 0.0
        %1296 = vmatprep.subr.mxu0 0.0
        %1297 = vmatpush1.msra.mxu0 0.0
        %1298 = vmatprep.subr.mxu0 0.0
        %1299 = vmatpush1.msra.mxu0 0.0
        %1300 = vmatprep.mubr.f32.mxu0 0.0
        %1301 = vmatmul.mubr.f32.gmra.mrb[0].mxu0 %v1153
        %v1302 = vpop.f32.mrb[0].mxu0
        %v1303 = vadd.f32 %v1149, %v1302
        %v1304 = vpop.f32.mrb[0].mxu0
        %1305 = vdwg.mxu0
        %v1306 = vmax.f32 %v1232, 0.0
        %v1307 = vmax.f32 %v1234, 0.0
        %v1308 = vmax.f32 %v1303, 0.0
        %v1311 = vcombine.low %v1306, %v1307
        %1313 = vst [vmem:[%s349] sm:$0xff] %v1311
        %1314 = vst.msk [vmem:[%s349 + $0x8] sm:$0xf] %vm972, %v1308
        %s1315 = sand.u32 %s212, 1
        %s1316 = scalar_lea.sflag [#allocation8], %s1315
        %s1317 = sand.u32 %s212, 1
        %s1318 = smul.addr %s1317, 12
        %s1319 = scalar_lea.vmem [#allocation11], %s1318
        // Predicated region
        $region61: #{tpu_custom_call.1} parent=51 // pred_check
          %p1320 = pneg %p222
        $region62: #{tpu_custom_call.1} parent=51 // pred_check_branch
          %1322 = sbr.rel (%p1320) target = $region64
        $region63: #{tpu_custom_call.1} parent=51 // pred_region
          %s1324 = ssub.s32 192, 192
          %1325 = vsyncadd %s1316, %s1324
          %s1326 = smul.addr %s26, 3
          %s1327 = smul.addr %s1326, 64
          %s1328 = scalar_lea.hbm %s8, %s1327
          %s1330 = sshll.u32 %s1319, 4
          %s1331 = int_to_ptr.vmem [resolvable:$true] %s1330
          %1333 = dma.vmem_to_hbm [thread:$0]  %s1331, 192, %s1328, %s1316
        $region64: #{tpu_custom_call.1} parent=51 // pred_fallthru
          _
      $region52: #{tpu_custom_call.1} parent=5 // pred_fallthru
        _
      %p1334 = scmp.le.s32.totalorder 2, %s21
      // Predicated region
      $region65: #{tpu_custom_call.1} parent=5 // pred_check
        %p1335 = pneg %p1334
      $region66: #{tpu_custom_call.1} parent=5 // pred_check_branch
        %1337 = sbr.rel (%p1335) target = $region68
      $region67: #{tpu_custom_call.1} parent=5 // pred_region
        %s1338 = ssub.s32 %s21, 2
        // Predicated region
        $region69: #{tpu_custom_call.1} parent=67 // pred_check
          %p1339 = pneg %p228
        $region70: #{tpu_custom_call.1} parent=67 // pred_check_branch
          %1341 = sbr.rel (%p1339) target = $region72
        $region71: #{tpu_custom_call.1} parent=67 // pred_region
          %s1342 = sand.u32 %s213, 1
          %s1343 = scalar_lea.sflag [#allocation8], %s1342
          %s1344 = sand.u32 %s213, 1
          %s1345 = smul.addr %s1344, 12
          %s1346 = scalar_lea.vmem [#allocation11], %s1345
          %1347 = dma.done %s1343, 192
        $region72: #{tpu_custom_call.1} parent=67 // pred_fallthru
          _
      $region68: #{tpu_custom_call.1} parent=5 // pred_fallthru
        _
    $region6: #{tpu_custom_call.1} parent=1 // loop_footer
      %s25 = sadd.s32 1, %s21
    $region7: #{tpu_custom_call.1} parent=1 // loop_footer_branch
      %20 = sbr.rel target = $region3
    $region8: #{tpu_custom_call.1} parent=1 // loop_exit
      _
    %1348 = vsyncpa [#allocation7], 1
    %s1349 = scalar_lea.sflag [#allocation7], 1
    %1350 = vsyncpa %s1349, 1
    %1351 = vsyncpa [#allocation10], 1
    %1352 = vsyncpa [#allocation8], 1
    %s1353 = scalar_lea.sflag [#allocation8], 1
    %1354 = vsyncpa %s1353, 1

</llo_original>
